<compile_context>
chip_gen: v7x
topology: tpu7x:2x2x1
jax: 0.10.0
libtpu: 0.0.40
codegen_flags: <defaults>
</compile_context>

<pallas_src>
import numpy as np
import jax
import jax.numpy as jnp
from jax.experimental import pallas as pl
from jax.experimental.pallas import tpu as pltpu


def calc_out_size(h, w, kernel_size, padding=0, stride=1):
    return ((h - kernel_size + 2 * padding) // stride + 1,
            (w - kernel_size + 2 * padding) // stride + 1)


def elu(v):
    # alpha = 1.0, matches torch.nn.functional.elu (exp goes to the EUP slot)
    return jnp.where(v > 0, v, jnp.exp(jnp.minimum(v, 0.0)) - 1.0)


# ----------------------------------------------------------------------------
# Pallas kernel: whole decoder forward as a single stacked matmul + ELU chain.
# ----------------------------------------------------------------------------
def decoder_kernel(x_ref, wfc_ref, bfc_ref, wfc2_ref, bfc2_ref,
                   m1_ref, b1_ref, m2_ref, b2_ref, out_ref, z_ref):
    tb = x_ref.shape[0]                      # batch tile
    half = wfc_ref.shape[1] // 2             # 64: latent size per stream
    n_out = out_ref.shape[1] // 2            # i_h * i_w

    # fc -> ELU (f32, tiny)
    h1 = elu(jnp.dot(x_ref[...], wfc_ref[...],
                     preferred_element_type=jnp.float32) + bfc_ref[...])

    # Stack the two decoder streams along the batch axis via VMEM scratch:
    # rows [0, tb)   -> stream 1 (h1[:, :64])
    # rows [tb, 2tb) -> stream 2 (h1[:, 64:])
    z_ref[:tb, :] = h1[:, :half]
    z_ref[tb:, :] = h1[:, half:]
    z = z_ref[...]

    # fc2 -> ELU (bf16 weights, f32 accumulation / bias / ELU)
    s = elu(jnp.dot(z.astype(jnp.bfloat16), wfc2_ref[...],
                    preferred_element_type=jnp.float32) + bfc2_ref[...])
    # deconv1 (dense matrix, padded to 640 cols) -> ELU
    s = elu(jnp.dot(s.astype(jnp.bfloat16), m1_ref[...],
                    preferred_element_type=jnp.float32) + b1_ref[...])
    # deconv2 fused with nearest-resize (dense 640x1024 matrix)
    out = jnp.dot(s.astype(jnp.bfloat16), m2_ref[...],
                  preferred_element_type=jnp.float32) + b2_ref[...]

    # Lane-dense output: channel 0 in lanes [0, n_out), channel 1 in the rest.
    out_ref[:, :n_out] = out[:tb, :]
    out_ref[:, n_out:] = out[tb:, :]


def decoder_forward(x, params, i_h, i_w, max_tile_b=256):
    wfc, bfc, wfc2, bfc2, m1, b1, m2f, b2f = params
    B, tdim = x.shape
    n_out = i_h * i_w
    half = wfc.shape[1] // 2

    tb = B if B <= max_tile_b else max_tile_b
    assert B % tb == 0, "batch must be divisible by the batch tile"
    grid = (B // tb,)

    def resident(a):  # weight / bias stays in VMEM across grid steps
        return pl.BlockSpec(a.shape, lambda i: (0, 0))

    out = pl.pallas_call(
        decoder_kernel,
        out_shape=jax.ShapeDtypeStruct((B, 2 * n_out), jnp.float32),
        grid_spec=pltpu.PrefetchScalarGridSpec(
            num_scalar_prefetch=0,
            grid=grid,
            in_specs=[pl.BlockSpec((tb, tdim), lambda i: (i, 0)),
                      resident(wfc), resident(bfc),
                      resident(wfc2), resident(bfc2),
                      resident(m1), resident(b1),
                      resident(m2f), resident(b2f)],
            out_specs=pl.BlockSpec((tb, 2 * n_out), lambda i: (i, 0)),
            scratch_shapes=[pltpu.VMEM((2 * tb, half), jnp.float32)]),
        compiler_params=pltpu.CompilerParams(
            dimension_semantics=("parallel",),
            vmem_limit_bytes=32 << 20),   # <= v7x 64 MiB physical VMEM
    )(x, wfc, bfc, wfc2, bfc2, m1, b1, m2f, b2f)
    # (B, 2*i_h*i_w) -> (B, 2, i_h, i_w)  == torch.cat((s1, s2), dim=1)
    return out.reshape(B, 2, i_h, i_w)


# ----------------------------------------------------------------------------
# Glue: dense matrices for ConvTranspose2d and nearest interpolation (offline).
# ----------------------------------------------------------------------------
def build_deconv_matrix(w, H, W, stride):
    # w: (Cin, Cout, K, K) PyTorch ConvTranspose2d weight, padding=0.
    cin, cout, k, _ = w.shape
    OH = (H - 1) * stride + k
    OW = (W - 1) * stride + k
    M = np.zeros((cin * H * W, cout * OH * OW), dtype=np.float32)
    for ci in range(cin):
        for ih in range(H):
            for iw in range(W):
                r = (ci * H + ih) * W + iw
                for kh in range(k):
                    oh = ih * stride + kh
                    for kw in range(k):
                        ow = iw * stride + kw
                        cols = (np.arange(cout) * OH + oh) * OW + ow
                        M[r, cols] += w[ci, :, kh, kw]
    return M, OH, OW


def build_nearest_interp_matrix(in_h, in_w, out_h, out_w):
    # F.interpolate(mode='nearest'): src = floor(dst * in / out)
    S = np.zeros((in_h * in_w, out_h * out_w), dtype=np.float32)
    src_h = (np.arange(out_h) * in_h) // out_h
    src_w = (np.arange(out_w) * in_w) // out_w
    for dh in range(out_h):
        for dw in range(out_w):
            S[src_h[dh] * in_w + src_w[dw], dh * out_w + dw] = 1.0
    return S


# ----------------------------------------------------------------------------
# Pure-JAX reference of the PyTorch forward (for verification).
# ----------------------------------------------------------------------------
def reference_forward(x, raw, i_h, i_w, h, w):
    wfc, bfc, wfc2, bfc2, wt1, bt1, wt2, bt2 = raw
    hp = jax.lax.Precision.HIGHEST

    def conv_t(inp, wgt, b, stride):
        _, _, k, _ = wgt.shape
        wc = jnp.transpose(wgt, (1, 0, 2, 3))[:, :, ::-1, ::-1]
        out = jax.lax.conv_general_dilated(
            inp, wc, window_strides=(1, 1),
            padding=[(k - 1, k - 1), (k - 1, k - 1)],
            lhs_dilation=(stride, stride),
            dimension_numbers=("NCHW", "OIHW", "NCHW"),
            precision=hp)
        return out + b[None, :, None, None]

    h1 = elu(jnp.dot(x, wfc.T, precision=hp) + bfc)

    def decoder(z):
        s = elu(jnp.dot(z, wfc2.T, precision=hp) + bfc2)
        s = s.reshape(-1, 32, h, w)
        s = elu(conv_t(s, wt1, bt1, 2))
        return conv_t(s, wt2, bt2, 4)

    s1 = decoder(h1[:, :64])
    s2 = decoder(h1[:, 64:])
    out = jnp.concatenate([s1, s2], axis=1)             # (B, 2, 28, 28)
    in_h, in_w = out.shape[2], out.shape[3]
    rows = (jnp.arange(i_h) * in_h) // i_h
    cols = (jnp.arange(i_w) * in_w) // i_w
    return out[:, :, rows][:, :, :, cols]


if __name__ == "__main__":
    i_h = i_w = 32          # observation_space[0].shape
    tactile_dim = 32
    B = 4

    h_, w_ = calc_out_size(i_h, i_w, 8, stride=4)       # (7, 7)
    h_, w_ = calc_out_size(h_, w_, 4, stride=2)         # (2, 2)

    key = jax.random.PRNGKey(0)
    ks = jax.random.split(key, 9)
    wfc_t = 0.1 * jax.random.normal(ks[0], (128, tactile_dim), jnp.float32)     # Linear(tactile,128)
    bfc = 0.1 * jax.random.normal(ks[1], (128,), jnp.float32)
    wfc2_t = 0.1 * jax.random.normal(ks[2], (h_ * w_ * 32, 64), jnp.float32)    # Linear(64, h*w*32)
    bfc2 = 0.1 * jax.random.normal(ks[3], (h_ * w_ * 32,), jnp.float32)
    wt1 = 0.1 * jax.random.normal(ks[4], (32, 16, 4, 4), jnp.float32)           # ConvT(32,16,4,s=2)
    bt1 = 0.1 * jax.random.normal(ks[5], (16,), jnp.float32)
    wt2 = 0.1 * jax.random.normal(ks[6], (16, 1, 8, 8), jnp.float32)            # ConvT(16,1,8,s=4)
    bt2 = 0.1 * jax.random.normal(ks[7], (1,), jnp.float32)
    x = jax.random.normal(ks[8], (B, tactile_dim), jnp.float32)

    # ---- offline weight preparation -------------------------------------
    m1_np, oh1, ow1 = build_deconv_matrix(np.asarray(wt1), h_, w_, 2)    # 128 -> 16*6*6=576
    m2_np, oh2, ow2 = build_deconv_matrix(np.asarray(wt2), oh1, ow1, 4)  # 576 -> 1*28*28=784
    interp_np = build_nearest_interp_matrix(oh2, ow2, i_h, i_w)          # 784 -> 1024

    # Fold the nearest-resize into deconv2:  (s@m2 + b2)@interp = s@(m2@interp) + b2@interp
    m2f_np = m2_np @ interp_np                                           # (576, 1024)
    b1_exp = np.repeat(np.asarray(bt1), oh1 * ow1)[None, :]              # (1, 576)
    b2_exp = np.repeat(np.asarray(bt2), oh2 * ow2)[None, :]              # (1, 784)
    b2f_np = b2_exp @ interp_np                                          # (1, 1024)

    # Zero-pad the deconv1 output dim 576 -> 640 (multiple of 128): padded
    # lanes stay 0 through ELU and the padded rows of m2f are zero.
    d1 = m1_np.shape[1]
    d1_pad = ((d1 + 127) // 128) * 128
    m1_pad = np.zeros((m1_np.shape[0], d1_pad), np.float32); m1_pad[:, :d1] = m1_np
    b1_pad = np.zeros((1, d1_pad), np.float32);              b1_pad[:, :d1] = b1_exp
    m2f_pad = np.zeros((d1_pad, m2f_np.shape[1]), np.float32); m2f_pad[:d1, :] = m2f_np

    # Big matrices in bf16 (halves HBM->VMEM weight traffic); biases stay f32.
    params = (jnp.asarray(wfc_t.T),                               # (32, 128)  f32
              jnp.asarray(bfc)[None, :],                          # (1, 128)   f32
              jnp.asarray(wfc2_t.T).astype(jnp.bfloat16),         # (64, 128)  bf16
              jnp.asarray(bfc2)[None, :],                         # (1, 128)   f32
              jnp.asarray(m1_pad).astype(jnp.bfloat16),           # (128, 640) bf16
              jnp.asarray(b1_pad),                                # (1, 640)   f32
              jnp.asarray(m2f_pad).astype(jnp.bfloat16),          # (640,1024) bf16
              jnp.asarray(b2f_np))                                # (1, 1024)  f32

    out = decoder_forward(x, params, i_h, i_w)
    out = jax.block_until_ready(out)

    ref = reference_forward(x, (wfc_t, bfc, wfc2_t, bfc2, wt1, bt1, wt2, bt2),
                            i_h, i_w, h_, w_)
    assert out.shape == (B, 2, i_h, i_w)
    # tolerance accounts for bf16 weight/activation quantization on the MXU path
    np.testing.assert_allclose(np.asarray(out), np.asarray(ref),
                               rtol=2e-2, atol=1e-2)
    print("KERNEL_OK")
</pallas_src>

<mosaic_0001>
module attributes {stable_mosaic.version = 11 : i64} {
  func.func @decoder_kernel(%arg0: i32, %arg1: memref<4x32xf32, #tpu.memory_space<vmem>>, %arg2: memref<32x128xf32, #tpu.memory_space<vmem>>, %arg3: memref<1x128xf32, #tpu.memory_space<vmem>>, %arg4: memref<64x128xbf16, #tpu.memory_space<vmem>>, %arg5: memref<1x128xf32, #tpu.memory_space<vmem>>, %arg6: memref<128x640xbf16, #tpu.memory_space<vmem>>, %arg7: memref<1x640xf32, #tpu.memory_space<vmem>>, %arg8: memref<640x1024xbf16, #tpu.memory_space<vmem>>, %arg9: memref<1x1024xf32, #tpu.memory_space<vmem>>, %arg10: memref<4x2048xf32, #tpu.memory_space<vmem>>, %arg11: memref<8x64xf32, #tpu.memory_space<vmem>>) attributes {dimension_semantics = [#tpu.dimension_semantics<parallel>], iteration_bounds = array<i64: 1>, scalar_prefetch = 0 : i64, scratch_operands = 1 : i64, tpu.core_type = #tpu.core_type<tc>, window_params = [{transform_indices = @transform_0, window_bounds = array<i64: 4, 32>}, {pipeline_mode = #tpu.pipeline_mode<synchronous>, transform_indices = @transform_1, window_bounds = array<i64: 32, 128>}, {pipeline_mode = #tpu.pipeline_mode<synchronous>, transform_indices = @transform_2, window_bounds = array<i64: 1, 128>}, {pipeline_mode = #tpu.pipeline_mode<synchronous>, transform_indices = @transform_3, window_bounds = array<i64: 64, 128>}, {pipeline_mode = #tpu.pipeline_mode<synchronous>, transform_indices = @transform_4, window_bounds = array<i64: 1, 128>}, {pipeline_mode = #tpu.pipeline_mode<synchronous>, transform_indices = @transform_5, window_bounds = array<i64: 128, 640>}, {pipeline_mode = #tpu.pipeline_mode<synchronous>, transform_indices = @transform_6, window_bounds = array<i64: 1, 640>}, {pipeline_mode = #tpu.pipeline_mode<synchronous>, transform_indices = @transform_7, window_bounds = array<i64: 640, 1024>}, {pipeline_mode = #tpu.pipeline_mode<synchronous>, transform_indices = @transform_8, window_bounds = array<i64: 1, 1024>}, {transform_indices = @transform_9, window_bounds = array<i64: 4, 2048>}]} {
    %c0 = arith.constant 0 : index
    %c0_0 = arith.constant 0 : index
    %0 = vector.load %arg1[%c0, %c0_0] : memref<4x32xf32, #tpu.memory_space<vmem>>, vector<4x32xf32>
    %c0_1 = arith.constant 0 : index
    %c0_2 = arith.constant 0 : index
    %1 = vector.load %arg2[%c0_1, %c0_2] : memref<32x128xf32, #tpu.memory_space<vmem>>, vector<32x128xf32>
    %cst = arith.constant dense<0.000000e+00> : vector<4x128xf32>
    %2 = tpu.matmul %0, %1, %cst {dimension_numbers = #tpu.dot_dimension_numbers<[1], [0], [0], [1], [0, 0, 1, 1], [], []>} : vector<4x32xf32>, vector<32x128xf32>, vector<4x128xf32> -> vector<4x128xf32>
    %c0_3 = arith.constant 0 : index
    %c0_4 = arith.constant 0 : index
    %3 = vector.load %arg3[%c0_3, %c0_4] : memref<1x128xf32, #tpu.memory_space<vmem>>, vector<1x128xf32>
    %4 = vector.broadcast %3 : vector<1x128xf32> to vector<4x128xf32>
    %5 = arith.addf %2, %4 : vector<4x128xf32>
    %cst_5 = arith.constant 0.000000e+00 : f32
    %6 = vector.broadcast %cst_5 : f32 to vector<4x128xf32>
    %7 = arith.cmpf ogt, %5, %6 : vector<4x128xf32>
    %cst_6 = arith.constant 0.000000e+00 : f32
    %8 = vector.broadcast %cst_6 : f32 to vector<4x128xf32>
    %9 = arith.minimumf %5, %8 : vector<4x128xf32>
    %10 = math.exp %9 : vector<4x128xf32>
    %cst_7 = arith.constant 1.000000e+00 : f32
    %11 = vector.broadcast %cst_7 : f32 to vector<4x128xf32>
    %12 = arith.subf %10, %11 : vector<4x128xf32>
    %13 = arith.select %7, %5, %12 : vector<4x128xi1>, vector<4x128xf32>
    %14 = vector.extract_strided_slice %13 {offsets = [0, 0], sizes = [4, 64], strides = [1, 1]} : vector<4x128xf32> to vector<4x64xf32>
    %c0_8 = arith.constant 0 : index
    %c0_9 = arith.constant 0 : index
    %15 = vector.load %arg11[%c0_8, %c0_9] : memref<8x64xf32, #tpu.memory_space<vmem>>, vector<4x64xf32>
    tpu.vector_store %arg11[%c0_8, %c0_9], %14 {strides = array<i32>} : memref<8x64xf32, #tpu.memory_space<vmem>>, vector<4x64xf32>,
    %16 = vector.extract_strided_slice %13 {offsets = [0, 64], sizes = [4, 64], strides = [1, 1]} : vector<4x128xf32> to vector<4x64xf32>
    %c4 = arith.constant 4 : index
    %c0_10 = arith.constant 0 : index
    %17 = vector.load %arg11[%c4, %c0_10] : memref<8x64xf32, #tpu.memory_space<vmem>>, vector<4x64xf32>
    tpu.vector_store %arg11[%c4, %c0_10], %16 {strides = array<i32>} : memref<8x64xf32, #tpu.memory_space<vmem>>, vector<4x64xf32>,
    %c0_11 = arith.constant 0 : index
    %c0_12 = arith.constant 0 : index
    %18 = vector.load %arg11[%c0_11, %c0_12] : memref<8x64xf32, #tpu.memory_space<vmem>>, vector<8x64xf32>
    %19 = arith.truncf %18 : vector<8x64xf32> to vector<8x64xbf16>
    %c0_13 = arith.constant 0 : index
    %c0_14 = arith.constant 0 : index
    %20 = vector.load %arg4[%c0_13, %c0_14] : memref<64x128xbf16, #tpu.memory_space<vmem>>, vector<64x128xbf16>
    %cst_15 = arith.constant dense<0.000000e+00> : vector<8x128xf32>
    %21 = tpu.matmul %19, %20, %cst_15 {dimension_numbers = #tpu.dot_dimension_numbers<[1], [0], [0], [1], [0, 0, 1, 1], [], []>} : vector<8x64xbf16>, vector<64x128xbf16>, vector<8x128xf32> -> vector<8x128xf32>
    %c0_16 = arith.constant 0 : index
    %c0_17 = arith.constant 0 : index
    %22 = vector.load %arg5[%c0_16, %c0_17] : memref<1x128xf32, #tpu.memory_space<vmem>>, vector<1x128xf32>
    %23 = vector.broadcast %22 : vector<1x128xf32> to vector<8x128xf32>
    %24 = arith.addf %21, %23 : vector<8x128xf32>
    %cst_18 = arith.constant 0.000000e+00 : f32
    %25 = vector.broadcast %cst_18 : f32 to vector<8x128xf32>
    %26 = arith.cmpf ogt, %24, %25 : vector<8x128xf32>
    %cst_19 = arith.constant 0.000000e+00 : f32
    %27 = vector.broadcast %cst_19 : f32 to vector<8x128xf32>
    %28 = arith.minimumf %24, %27 : vector<8x128xf32>
    %29 = math.exp %28 : vector<8x128xf32>
    %cst_20 = arith.constant 1.000000e+00 : f32
    %30 = vector.broadcast %cst_20 : f32 to vector<8x128xf32>
    %31 = arith.subf %29, %30 : vector<8x128xf32>
    %32 = arith.select %26, %24, %31 : vector<8x128xi1>, vector<8x128xf32>
    %33 = arith.truncf %32 : vector<8x128xf32> to vector<8x128xbf16>
    %c0_21 = arith.constant 0 : index
    %c0_22 = arith.constant 0 : index
    %34 = vector.load %arg6[%c0_21, %c0_22] : memref<128x640xbf16, #tpu.memory_space<vmem>>, vector<128x640xbf16>
    %cst_23 = arith.constant dense<0.000000e+00> : vector<8x640xf32>
    %35 = tpu.matmul %33, %34, %cst_23 {dimension_numbers = #tpu.dot_dimension_numbers<[1], [0], [0], [1], [0, 0, 1, 1], [], []>} : vector<8x128xbf16>, vector<128x640xbf16>, vector<8x640xf32> -> vector<8x640xf32>
    %c0_24 = arith.constant 0 : index
    %c0_25 = arith.constant 0 : index
    %36 = vector.load %arg7[%c0_24, %c0_25] : memref<1x640xf32, #tpu.memory_space<vmem>>, vector<1x640xf32>
    %37 = vector.broadcast %36 : vector<1x640xf32> to vector<8x640xf32>
    %38 = arith.addf %35, %37 : vector<8x640xf32>
    %cst_26 = arith.constant 0.000000e+00 : f32
    %39 = vector.broadcast %cst_26 : f32 to vector<8x640xf32>
    %40 = arith.cmpf ogt, %38, %39 : vector<8x640xf32>
    %cst_27 = arith.constant 0.000000e+00 : f32
    %41 = vector.broadcast %cst_27 : f32 to vector<8x640xf32>
    %42 = arith.minimumf %38, %41 : vector<8x640xf32>
    %43 = math.exp %42 : vector<8x640xf32>
    %cst_28 = arith.constant 1.000000e+00 : f32
    %44 = vector.broadcast %cst_28 : f32 to vector<8x640xf32>
    %45 = arith.subf %43, %44 : vector<8x640xf32>
    %46 = arith.select %40, %38, %45 : vector<8x640xi1>, vector<8x640xf32>
    %47 = arith.truncf %46 : vector<8x640xf32> to vector<8x640xbf16>
    %c0_29 = arith.constant 0 : index
    %c0_30 = arith.constant 0 : index
    %48 = vector.load %arg8[%c0_29, %c0_30] : memref<640x1024xbf16, #tpu.memory_space<vmem>>, vector<640x1024xbf16>
    %cst_31 = arith.constant dense<0.000000e+00> : vector<8x1024xf32>
    %49 = tpu.matmul %47, %48, %cst_31 {dimension_numbers = #tpu.dot_dimension_numbers<[1], [0], [0], [1], [0, 0, 1, 1], [], []>} : vector<8x640xbf16>, vector<640x1024xbf16>, vector<8x1024xf32> -> vector<8x1024xf32>
    %c0_32 = arith.constant 0 : index
    %c0_33 = arith.constant 0 : index
    %50 = vector.load %arg9[%c0_32, %c0_33] : memref<1x1024xf32, #tpu.memory_space<vmem>>, vector<1x1024xf32>
    %51 = vector.broadcast %50 : vector<1x1024xf32> to vector<8x1024xf32>
    %52 = arith.addf %49, %51 : vector<8x1024xf32>
    %53 = vector.extract_strided_slice %52 {offsets = [0, 0], sizes = [4, 1024], strides = [1, 1]} : vector<8x1024xf32> to vector<4x1024xf32>
    %c0_34 = arith.constant 0 : index
    %c0_35 = arith.constant 0 : index
    %54 = vector.load %arg10[%c0_34, %c0_35] : memref<4x2048xf32, #tpu.memory_space<vmem>>, vector<4x1024xf32>
    tpu.vector_store %arg10[%c0_34, %c0_35], %53 {strides = array<i32>} : memref<4x2048xf32, #tpu.memory_space<vmem>>, vector<4x1024xf32>,
    %55 = vector.extract_strided_slice %52 {offsets = [4, 0], sizes = [4, 1024], strides = [1, 1]} : vector<8x1024xf32> to vector<4x1024xf32>
    %c0_36 = arith.constant 0 : index
    %c1024 = arith.constant 1024 : index
    %56 = vector.load %arg10[%c0_36, %c1024] : memref<4x2048xf32, #tpu.memory_space<vmem>>, vector<4x1024xf32>
    tpu.vector_store %arg10[%c0_36, %c1024], %55 {strides = array<i32>} : memref<4x2048xf32, #tpu.memory_space<vmem>>, vector<4x1024xf32>,
    return
  }
  func.func @transform_0(%arg0: i32) -> (i32, i32) {
    %c0_i32 = arith.constant 0 : i32
    %c0_i32_0 = arith.constant 0 : i32
    return %arg0, %c0_i32 : i32, i32
  }
  func.func @transform_1(%arg0: i32) -> (i32, i32) {
    %c0_i32 = arith.constant 0 : i32
    %c0_i32_0 = arith.constant 0 : i32
    %c0_i32_1 = arith.constant 0 : i32
    return %c0_i32, %c0_i32_0 : i32, i32
  }
  func.func @transform_2(%arg0: i32) -> (i32, i32) {
    %c0_i32 = arith.constant 0 : i32
    %c0_i32_0 = arith.constant 0 : i32
    %c0_i32_1 = arith.constant 0 : i32
    return %c0_i32, %c0_i32_0 : i32, i32
  }
  func.func @transform_3(%arg0: i32) -> (i32, i32) {
    %c0_i32 = arith.constant 0 : i32
    %c0_i32_0 = arith.constant 0 : i32
    %c0_i32_1 = arith.constant 0 : i32
    return %c0_i32, %c0_i32_0 : i32, i32
  }
  func.func @transform_4(%arg0: i32) -> (i32, i32) {
    %c0_i32 = arith.constant 0 : i32
    %c0_i32_0 = arith.constant 0 : i32
    %c0_i32_1 = arith.constant 0 : i32
    return %c0_i32, %c0_i32_0 : i32, i32
  }
  func.func @transform_5(%arg0: i32) -> (i32, i32) {
    %c0_i32 = arith.constant 0 : i32
    %c0_i32_0 = arith.constant 0 : i32
    %c0_i32_1 = arith.constant 0 : i32
    return %c0_i32, %c0_i32_0 : i32, i32
  }
  func.func @transform_6(%arg0: i32) -> (i32, i32) {
    %c0_i32 = arith.constant 0 : i32
    %c0_i32_0 = arith.constant 0 : i32
    %c0_i32_1 = arith.constant 0 : i32
    return %c0_i32, %c0_i32_0 : i32, i32
  }
  func.func @transform_7(%arg0: i32) -> (i32, i32) {
    %c0_i32 = arith.constant 0 : i32
    %c0_i32_0 = arith.constant 0 : i32
    %c0_i32_1 = arith.constant 0 : i32
    return %c0_i32, %c0_i32_0 : i32, i32
  }
  func.func @transform_8(%arg0: i32) -> (i32, i32) {
    %c0_i32 = arith.constant 0 : i32
    %c0_i32_0 = arith.constant 0 : i32
    %c0_i32_1 = arith.constant 0 : i32
    return %c0_i32, %c0_i32_0 : i32, i32
  }
  func.func @transform_9(%arg0: i32) -> (i32, i32) {
    %c0_i32 = arith.constant 0 : i32
    %c0_i32_0 = arith.constant 0 : i32
    return %arg0, %c0_i32 : i32, i32
  }
}

</mosaic_0001>

<llo_original>
// kernel: tpu_custom_call.1
$region0: #{tpu_custom_call.1}
  #allocation0 [shape = 'u32[]', space=smem, size = 0x4, offset = 0x4, fixed_abs, tag = 'smem constant byte address 0x4 - core index']
  #allocation1 [shape = 'u32[144,128]{1,0:T(1,128)}', space=vmem, size = 0x12000, scoped, tag = 'internal scratch']
  #allocation2 [shape = 'f32[8,64]{1,0:T(8,128)}', space=vmem, size = 0x1000, scoped, tag = 'scratch operand']
  %s0 = inlined_call_operand.hbm [shape: f32[4,32], index: 0, kind: input, shape index: {}]
  %s1 = inlined_call_operand.hbm [shape: f32[32,128], index: 1, kind: input, shape index: {}]
  %s2 = inlined_call_operand.hbm [shape: f32[1,128], index: 2, kind: input, shape index: {}]
  %s3 = inlined_call_operand.hbm [shape: bf16[64,128], index: 3, kind: input, shape index: {}]
  %s4 = inlined_call_operand.hbm [shape: f32[1,128], index: 4, kind: input, shape index: {}]
  %s5 = inlined_call_operand.hbm [shape: bf16[128,640], index: 5, kind: input, shape index: {}]
  %s6 = inlined_call_operand.hbm [shape: f32[1,640], index: 6, kind: input, shape index: {}]
  %s7 = inlined_call_operand.hbm [shape: bf16[640,1024], index: 7, kind: input, shape index: {}]
  %s8 = inlined_call_operand.hbm [shape: f32[1,1024], index: 8, kind: input, shape index: {}]
  %s9 = inlined_call_operand.hbm [shape: f32[4,2048], index: 9, kind: output, shape index: {}]
  %s10 = sld [smem:[#allocation0]]
  $region82: #{tpu_custom_call.1} parent=0
    _
  %s12 = ssub.s32 1, %s10
  %s13 = scalar_select 0, %s12, %s10
  $region1: #{tpu_custom_call.1} parent=0
    #allocation3 [shape = 'u8[2048]{0}', space=vmem, size = 0x800, scoped, tag = 'input window, operand 0, single buffered']
    #allocation4 [shape = 's32[1]{0}', space=sflag, size = 0x4, scoped, tag = 'scoped memory for tpu_custom_call.1']
    #allocation5 [shape = 's32[1]{0}', space=sflag, size = 0x4, scoped, tag = 'scoped memory for tpu_custom_call.1']
    #allocation6 [shape = 'u8[16384]{0}', space=vmem, size = 0x4000, scoped, tag = 'input window, operand 1, single buffered']
    #allocation7 [shape = 's32[1]{0}', space=sflag, size = 0x4, scoped, tag = 'scoped memory for tpu_custom_call.1']
    #allocation8 [shape = 'u8[512]{0}', space=vmem, size = 0x400, scoped, tag = 'input window, operand 2, single buffered']
    #allocation9 [shape = 'u8[16384]{0}', space=vmem, size = 0x4000, scoped, tag = 'input window, operand 3, single buffered']
    #allocation10 [shape = 's32[1]{0}', space=sflag, size = 0x4, scoped, tag = 'scoped memory for tpu_custom_call.1']
    #allocation11 [shape = 'u8[512]{0}', space=vmem, size = 0x400, scoped, tag = 'input window, operand 4, single buffered']
    #allocation12 [shape = 'u8[163840]{0}', space=vmem, size = 0x28000, scoped, tag = 'input window, operand 5, single buffered']
    #allocation13 [shape = 's32[1]{0}', space=sflag, size = 0x4, scoped, tag = 'scoped memory for tpu_custom_call.1']
    #allocation14 [shape = 'u8[2560]{0}', space=vmem, size = 0xc00, scoped, tag = 'input window, operand 6, single buffered']
    #allocation15 [shape = 'u8[1310720]{0}', space=vmem, size = 0x140000, scoped, tag = 'input window, operand 7, single buffered']
    #allocation16 [shape = 's32[1]{0}', space=sflag, size = 0x4, scoped, tag = 'scoped memory for tpu_custom_call.1']
    #allocation17 [shape = 'u8[4096]{0}', space=vmem, size = 0x1000, scoped, tag = 'input window, operand 8, single buffered']
    #allocation18 [shape = 'u8[32768]{0}', space=vmem, size = 0x8000, scoped, tag = 'output window, operand 0, single buffered']
    %14 = vsyncpa [#allocation4], 0
    %15 = vsyncpa [#allocation7], 0
    %16 = vsyncpa [#allocation10], 0
    %17 = vsyncpa [#allocation13], 0
    %18 = vsyncpa [#allocation16], 0
    %19 = vsyncpa [#allocation5], 0
    // Predicated region
    $region2: #{tpu_custom_call.1} parent=1 // pred_check
      _
    $region3: #{tpu_custom_call.1} parent=1 // pred_check_branch
      %21 = sbr.rel (0) target = $region5
    $region4: #{tpu_custom_call.1} parent=1 // pred_region
      %s23 = ssub.s32 64, 64
      %24 = vsyncadd [#allocation4], %s23
      %s26 = sshll.u32 [#allocation3], 4
      %s27 = int_to_ptr.vmem [resolvable:$true] %s26
      %29 = dma.hbm_to_vmem [thread:$0]  %s0, 64, %s27, [#allocation4]
    $region5: #{tpu_custom_call.1} parent=1 // pred_fallthru
      _
    // Predicated region
    $region6: #{tpu_custom_call.1} parent=1 // pred_check
      _
    $region7: #{tpu_custom_call.1} parent=1 // pred_check_branch
      %31 = sbr.rel (0) target = $region9
    $region8: #{tpu_custom_call.1} parent=1 // pred_region
      %s33 = ssub.s32 512, 512
      %34 = vsyncadd [#allocation7], %s33
      %s35 = sshll.u32 [#allocation6], 4
      %s36 = int_to_ptr.vmem [resolvable:$true] %s35
      %41 = dma.hbm_to_vmem [thread:$0]  %s1, 512, %s36, [#allocation7], 128, 128, 8
    $region9: #{tpu_custom_call.1} parent=1 // pred_fallthru
      _
    // Predicated region
    $region10: #{tpu_custom_call.1} parent=1 // pred_check
      _
    $region11: #{tpu_custom_call.1} parent=1 // pred_check_branch
      %43 = sbr.rel (0) target = $region13
    $region12: #{tpu_custom_call.1} parent=1 // pred_region
      %s45 = ssub.s32 16, 16
      %46 = vsyncadd [#allocation7], %s45
      %s48 = sshll.u32 [#allocation8], 4
      %s49 = int_to_ptr.vmem [resolvable:$true] %s48
      %51 = dma.hbm_to_vmem [thread:$0]  %s2, 16, %s49, [#allocation7]
    $region13: #{tpu_custom_call.1} parent=1 // pred_fallthru
      _
    // Predicated region
    $region14: #{tpu_custom_call.1} parent=1 // pred_check
      _
    $region15: #{tpu_custom_call.1} parent=1 // pred_check_branch
      %53 = sbr.rel (0) target = $region17
    $region16: #{tpu_custom_call.1} parent=1 // pred_region
      %s55 = ssub.s32 512, 512
      %56 = vsyncadd [#allocation10], %s55
      %s57 = sshll.u32 [#allocation9], 4
      %s58 = int_to_ptr.vmem [resolvable:$true] %s57
      %63 = dma.hbm_to_vmem [thread:$0]  %s3, 512, %s58, [#allocation10], 64, 64, 4
    $region17: #{tpu_custom_call.1} parent=1 // pred_fallthru
      _
    // Predicated region
    $region18: #{tpu_custom_call.1} parent=1 // pred_check
      _
    $region19: #{tpu_custom_call.1} parent=1 // pred_check_branch
      %65 = sbr.rel (0) target = $region21
    $region20: #{tpu_custom_call.1} parent=1 // pred_region
      %s67 = ssub.s32 16, 16
      %68 = vsyncadd [#allocation10], %s67
      %s70 = sshll.u32 [#allocation11], 4
      %s71 = int_to_ptr.vmem [resolvable:$true] %s70
      %73 = dma.hbm_to_vmem [thread:$0]  %s4, 16, %s71, [#allocation10]
    $region21: #{tpu_custom_call.1} parent=1 // pred_fallthru
      _
    // Predicated region
    $region22: #{tpu_custom_call.1} parent=1 // pred_check
      _
    $region23: #{tpu_custom_call.1} parent=1 // pred_check_branch
      %75 = sbr.rel (0) target = $region25
    $region24: #{tpu_custom_call.1} parent=1 // pred_region
      %s77 = ssub.s32 5120, 5120
      %78 = vsyncadd [#allocation13], %s77
      %s79 = sshll.u32 [#allocation12], 4
      %s80 = int_to_ptr.vmem [resolvable:$true] %s79
      %85 = dma.hbm_to_vmem [thread:$0]  %s5, 5120, %s80, [#allocation13], 320, 320, 20
    $region25: #{tpu_custom_call.1} parent=1 // pred_fallthru
      _
    // Predicated region
    $region26: #{tpu_custom_call.1} parent=1 // pred_check
      _
    $region27: #{tpu_custom_call.1} parent=1 // pred_check_branch
      %87 = sbr.rel (0) target = $region29
    $region28: #{tpu_custom_call.1} parent=1 // pred_region
      %s89 = ssub.s32 80, 80
      %90 = vsyncadd [#allocation13], %s89
      %s92 = sshll.u32 [#allocation14], 4
      %s93 = int_to_ptr.vmem [resolvable:$true] %s92
      %95 = dma.hbm_to_vmem [thread:$0]  %s6, 80, %s93, [#allocation13]
    $region29: #{tpu_custom_call.1} parent=1 // pred_fallthru
      _
    // Predicated region
    $region30: #{tpu_custom_call.1} parent=1 // pred_check
      _
    $region31: #{tpu_custom_call.1} parent=1 // pred_check_branch
      %97 = sbr.rel (0) target = $region33
    $region32: #{tpu_custom_call.1} parent=1 // pred_region
      %s99 = ssub.s32 40960, 40960
      %100 = vsyncadd [#allocation16], %s99
      %s101 = sshll.u32 [#allocation15], 4
      %s102 = int_to_ptr.vmem [resolvable:$true] %s101
      %107 = dma.hbm_to_vmem [thread:$0]  %s7, 40960, %s102, [#allocation16], 512, 512, 32
    $region33: #{tpu_custom_call.1} parent=1 // pred_fallthru
      _
    // Predicated region
    $region34: #{tpu_custom_call.1} parent=1 // pred_check
      _
    $region35: #{tpu_custom_call.1} parent=1 // pred_check_branch
      %109 = sbr.rel (0) target = $region37
    $region36: #{tpu_custom_call.1} parent=1 // pred_region
      %s111 = ssub.s32 128, 128
      %112 = vsyncadd [#allocation16], %s111
      %s114 = sshll.u32 [#allocation17], 4
      %s115 = int_to_ptr.vmem [resolvable:$true] %s114
      %117 = dma.hbm_to_vmem [thread:$0]  %s8, 128, %s115, [#allocation16]
    $region37: #{tpu_custom_call.1} parent=1 // pred_fallthru
      _
    // Predicated region
    $region38: #{tpu_custom_call.1} parent=1 // pred_check
      _
    $region39: #{tpu_custom_call.1} parent=1 // pred_check_branch
      %119 = sbr.rel (0) target = $region41
    $region40: #{tpu_custom_call.1} parent=1 // pred_region
      %120 = dma.done [#allocation4], 64
    $region41: #{tpu_custom_call.1} parent=1 // pred_fallthru
      _
    // Predicated region
    $region42: #{tpu_custom_call.1} parent=1 // pred_check
      _
    $region43: #{tpu_custom_call.1} parent=1 // pred_check_branch
      %122 = sbr.rel (0) target = $region45
    $region44: #{tpu_custom_call.1} parent=1 // pred_region
      %123 = dma.done [#allocation7], 512
    $region45: #{tpu_custom_call.1} parent=1 // pred_fallthru
      _
    // Predicated region
    $region46: #{tpu_custom_call.1} parent=1 // pred_check
      _
    $region47: #{tpu_custom_call.1} parent=1 // pred_check_branch
      %125 = sbr.rel (0) target = $region49
    $region48: #{tpu_custom_call.1} parent=1 // pred_region
      %126 = dma.done [#allocation7], 16
    $region49: #{tpu_custom_call.1} parent=1 // pred_fallthru
      _
    // Predicated region
    $region50: #{tpu_custom_call.1} parent=1 // pred_check
      _
    $region51: #{tpu_custom_call.1} parent=1 // pred_check_branch
      %128 = sbr.rel (0) target = $region53
    $region52: #{tpu_custom_call.1} parent=1 // pred_region
      %129 = dma.done [#allocation10], 512
    $region53: #{tpu_custom_call.1} parent=1 // pred_fallthru
      _
    // Predicated region
    $region54: #{tpu_custom_call.1} parent=1 // pred_check
      _
    $region55: #{tpu_custom_call.1} parent=1 // pred_check_branch
      %131 = sbr.rel (0) target = $region57
    $region56: #{tpu_custom_call.1} parent=1 // pred_region
      %132 = dma.done [#allocation10], 16
    $region57: #{tpu_custom_call.1} parent=1 // pred_fallthru
      _
    // Predicated region
    $region58: #{tpu_custom_call.1} parent=1 // pred_check
      _
    $region59: #{tpu_custom_call.1} parent=1 // pred_check_branch
      %134 = sbr.rel (0) target = $region61
    $region60: #{tpu_custom_call.1} parent=1 // pred_region
      %135 = dma.done [#allocation13], 5120
    $region61: #{tpu_custom_call.1} parent=1 // pred_fallthru
      _
    // Predicated region
    $region62: #{tpu_custom_call.1} parent=1 // pred_check
      _
    $region63: #{tpu_custom_call.1} parent=1 // pred_check_branch
      %137 = sbr.rel (0) target = $region65
    $region64: #{tpu_custom_call.1} parent=1 // pred_region
      %138 = dma.done [#allocation13], 80
    $region65: #{tpu_custom_call.1} parent=1 // pred_fallthru
      _
    // Predicated region
    $region66: #{tpu_custom_call.1} parent=1 // pred_check
      _
    $region67: #{tpu_custom_call.1} parent=1 // pred_check_branch
      %140 = sbr.rel (0) target = $region69
    $region68: #{tpu_custom_call.1} parent=1 // pred_region
      %141 = dma.done [#allocation16], 40960
    $region69: #{tpu_custom_call.1} parent=1 // pred_fallthru
      _
    // Predicated region
    $region70: #{tpu_custom_call.1} parent=1 // pred_check
      _
    $region71: #{tpu_custom_call.1} parent=1 // pred_check_branch
      %143 = sbr.rel (0) target = $region73
    $region72: #{tpu_custom_call.1} parent=1 // pred_region
      %144 = dma.done [#allocation16], 128
    $region73: #{tpu_custom_call.1} parent=1 // pred_fallthru
      _
    %v146 = vld [vmem:[#allocation3] sm:$0xf]
    %v147 = vld [vmem:[#allocation6] sm:$0xff]
    %v148 = vld [vmem:[#allocation6 + $0x8] sm:$0xff]
    %v149 = vld [vmem:[#allocation6 + $0x10] sm:$0xff]
    %v150 = vld [vmem:[#allocation6 + $0x18] sm:$0xff]
    %v151 = vld [vmem:[#allocation8] sm:$0x1]
    %v153 = vlaneseq
    %v154 = vshrl.u32 %v153, 7
    %v155 = vsub.s32 0, %v154
    %v156 = vrot.slane %v151, %v155
    %vm158 = vcmask 261120
    %v160 = vsel %vm158, %v146, 0
    %162 = vmatprep.subr.mxu0 0.0
    %163 = vmatpush1.msra.mxu0 %v147
    %164 = vmatprep.subr.mxu0 0.0
    %165 = vmatpush1.msra.mxu0 %v148
    %166 = vmatprep.subr.mxu0 0.0
    %167 = vmatpush1.msra.mxu0 %v149
    %168 = vmatprep.subr.mxu0 0.0
    %169 = vmatpush1.msra.mxu0 %v150
    %170 = vmatprep.subr.mxu0 0.0
    %171 = vmatpush1.msra.mxu0 0.0
    %172 = vmatprep.subr.mxu0 0.0
    %173 = vmatpush1.msra.mxu0 0.0
    %174 = vmatprep.subr.mxu0 0.0
    %175 = vmatpush1.msra.mxu0 0.0
    %176 = vmatprep.subr.mxu0 0.0
    %177 = vmatpush1.msra.mxu0 0.0
    %178 = vmatprep.subr.mxu0 0.0
    %179 = vmatpush1.msra.mxu0 0.0
    %180 = vmatprep.subr.mxu0 0.0
    %181 = vmatpush1.msra.mxu0 0.0
    %182 = vmatprep.subr.mxu0 0.0
    %183 = vmatpush1.msra.mxu0 0.0
    %184 = vmatprep.subr.mxu0 0.0
    %185 = vmatpush1.msra.mxu0 0.0
    %186 = vmatprep.subr.mxu0 0.0
    %187 = vmatpush1.msra.mxu0 0.0
    %188 = vmatprep.subr.mxu0 0.0
    %189 = vmatpush1.msra.mxu0 0.0
    %190 = vmatprep.subr.mxu0 0.0
    %191 = vmatpush1.msra.mxu0 0.0
    %192 = vmatprep.subr.mxu0 0.0
    %193 = vmatpush1.msra.mxu0 0.0
    %194 = vmatprep.subr.mxu0 0.0
    %195 = vmatpush1.msra.mxu0 0.0
    %196 = vmatprep.subr.mxu0 0.0
    %197 = vmatpush1.msra.mxu0 0.0
    %198 = vmatprep.subr.mxu0 0.0
    %199 = vmatpush1.msra.mxu0 0.0
    %200 = vmatprep.subr.mxu0 0.0
    %201 = vmatpush1.msra.mxu0 0.0
    %202 = vmatprep.subr.mxu0 0.0
    %203 = vmatpush1.msra.mxu0 0.0
    %204 = vmatprep.subr.mxu0 0.0
    %205 = vmatpush1.msra.mxu0 0.0
    %206 = vmatprep.subr.mxu0 0.0
    %207 = vmatpush1.msra.mxu0 0.0
    %208 = vmatprep.subr.mxu0 0.0
    %209 = vmatpush1.msra.mxu0 0.0
    %210 = vmatprep.subr.mxu0 0.0
    %211 = vmatpush1.msra.mxu0 0.0
    %212 = vmatprep.subr.mxu0 0.0
    %213 = vmatpush1.msra.mxu0 0.0
    %214 = vmatprep.subr.mxu0 0.0
    %215 = vmatpush1.msra.mxu0 0.0
    %216 = vmatprep.subr.mxu0 0.0
    %217 = vmatpush1.msra.mxu0 0.0
    %218 = vmatprep.subr.mxu0 0.0
    %219 = vmatpush1.msra.mxu0 0.0
    %220 = vmatprep.subr.mxu0 0.0
    %221 = vmatpush1.msra.mxu0 0.0
    %222 = vmatprep.subr.mxu0 0.0
    %223 = vmatpush1.msra.mxu0 0.0
    %224 = vmatprep.subr.mxu0 0.0
    %225 = vmatpush1.msra.mxu0 0.0
    %226 = vmatprep.mubr.f32.mxu0 0.0
    %227 = vmatmul.mubr.f32.gmra.mrb[0].mxu0 %v160
    %v228 = vpop.f32.mrb[0].mxu0
    %v229 = vadd.f32 %v156, %v228
    %v230 = vpop.f32.mrb[0].mxu0
    %231 = vdwg.mxu0
    %vm232 = vcmp.gt.f32.partialorder %v229, 0.0
    %v233 = vmin.f32 %v229, 0.0
    %v234 = vmul.f32 %v233, 1.442695
    %v235 = vpow.pop %v234
    %v236 = vsub.f32 %v235, 1.0
    %v237 = vsel %vm232, %v229, %v236
    %vm238 = vcmask 519168
    %239 = vst.msk [vmem:[#allocation2] sm:$0xf] %vm238, %v237
    %241 = vrot.lane.b32.xlu0 %v237, 64
    %v242 = vpop.permute.xlu0 %241
    %244 = vst.msk [vmem:[#allocation2 + $0x4] sm:$0xf] %vm238, %v242
    %v245 = vld [vmem:[#allocation2] sm:$0xff]
    %v246 = vpack.c.bf16 %v245, %v245
    %v247 = vld [vmem:[#allocation9] sm:$0xf]
    %v248 = vld [vmem:[#allocation9 + $0x4] sm:$0xf]
    %v249 = vld [vmem:[#allocation9 + $0x8] sm:$0xf]
    %v250 = vld [vmem:[#allocation9 + $0xc] sm:$0xf]
    %v251 = vld [vmem:[#allocation9 + $0x10] sm:$0xf]
    %v252 = vld [vmem:[#allocation9 + $0x14] sm:$0xf]
    %v253 = vld [vmem:[#allocation9 + $0x18] sm:$0xf]
    %v254 = vld [vmem:[#allocation9 + $0x1c] sm:$0xf]
    %v255 = vld [vmem:[#allocation11] sm:$0x1]
    %v257 = vlaneseq
    %v258 = vshrl.u32 %v257, 7
    %v259 = vsub.s32 0, %v258
    %v260 = vrot.slane %v255, %v259
    %v270 = vunpack.c.l.b16 %v247
    %v271 = vunpack.c.l.b16 %v248
    %v272 = vunpack.c.l.b16 %v249
    %v273 = vunpack.c.l.b16 %v250
    %v274 = vunpack.c.l.b16 %v251
    %v275 = vunpack.c.l.b16 %v252
    %v276 = vunpack.c.l.b16 %v253
    %v277 = vunpack.c.l.b16 %v254
    %v278 = vpack.c.b16 %v271, %v270
    %v279 = vpack.c.b16 %v273, %v272
    %v280 = vpack.c.b16 %v275, %v274
    %v281 = vpack.c.b16 %v277, %v276
    %vm286 = vcmask 523264
    %v288 = vsel %vm286, %v246, 0
    %290 = vmatprep.subr.bf16.mxu0 0
    %291 = vmatpush1.bf16.msra.mxu0 %v278
    %292 = vmatprep.subr.bf16.mxu0 0
    %293 = vmatpush1.bf16.msra.mxu0 %v279
    %294 = vmatprep.subr.bf16.mxu0 0
    %295 = vmatpush1.bf16.msra.mxu0 %v280
    %296 = vmatprep.subr.bf16.mxu0 0
    %297 = vmatpush1.bf16.msra.mxu0 %v281
    %298 = vmatprep.subr.bf16.mxu0 0
    %299 = vmatpush1.bf16.msra.mxu0 0
    %300 = vmatprep.subr.bf16.mxu0 0
    %301 = vmatpush1.bf16.msra.mxu0 0
    %302 = vmatprep.subr.bf16.mxu0 0
    %303 = vmatpush1.bf16.msra.mxu0 0
    %304 = vmatprep.subr.bf16.mxu0 0
    %305 = vmatpush1.bf16.msra.mxu0 0
    %306 = vmatprep.subr.bf16.mxu0 0
    %307 = vmatpush1.bf16.msra.mxu0 0
    %308 = vmatprep.subr.bf16.mxu0 0
    %309 = vmatpush1.bf16.msra.mxu0 0
    %310 = vmatprep.subr.bf16.mxu0 0
    %311 = vmatpush1.bf16.msra.mxu0 0
    %312 = vmatprep.subr.bf16.mxu0 0
    %313 = vmatpush1.bf16.msra.mxu0 0
    %314 = vmatprep.subr.bf16.mxu0 0
    %315 = vmatpush1.bf16.msra.mxu0 0
    %316 = vmatprep.subr.bf16.mxu0 0
    %317 = vmatpush1.bf16.msra.mxu0 0
    %318 = vmatprep.subr.bf16.mxu0 0
    %319 = vmatpush1.bf16.msra.mxu0 0
    %320 = vmatprep.subr.bf16.mxu0 0
    %321 = vmatpush1.bf16.msra.mxu0 0
    %322 = vmatprep.mubr.bf16.mxu0 0
    %323 = vmatmul.mubr.bf16.gmra.mrb[0].mxu0 %v288
    %v324 = vpop.f32.mrb[0].mxu0
    %v325 = vadd.f32 %v260, %v324
    %v326 = vpop.f32.mrb[0].mxu0
    %v327 = vpop.f32.mrb[0].mxu0
    %v328 = vpop.f32.mrb[0].mxu0
    %329 = vdwg.mxu0
    %vm330 = vcmp.gt.f32.partialorder %v325, 0.0
    %v331 = vmin.f32 %v325, 0.0
    %v332 = vmul.f32 %v331, 1.442695
    %v333 = vpow.pop %v332
    %v334 = vsub.f32 %v333, 1.0
    %v335 = vsel %vm330, %v325, %v334
    %v336 = vpack.c.bf16 %v335, %v335
    %v337 = vld [vmem:[#allocation12] sm:$0xff]
    %v338 = vld [vmem:[#allocation12 + $0x8] sm:$0xff]
    %v339 = vld [vmem:[#allocation12 + $0x10] sm:$0xf]
    %v340 = vld [vmem:[#allocation12 + $0x14] sm:$0xff]
    %v341 = vld [vmem:[#allocation12 + $0x1c] sm:$0xff]
    %v342 = vld [vmem:[#allocation12 + $0x24] sm:$0xf]
    %v343 = vld [vmem:[#allocation12 + $0x28] sm:$0xff]
    %v344 = vld [vmem:[#allocation12 + $0x30] sm:$0xff]
    %v345 = vld [vmem:[#allocation12 + $0x38] sm:$0xf]
    %v346 = vld [vmem:[#allocation12 + $0x3c] sm:$0xff]
    %v347 = vld [vmem:[#allocation12 + $0x44] sm:$0xff]
    %v348 = vld [vmem:[#allocation12 + $0x4c] sm:$0xf]
    %v349 = vld [vmem:[#allocation12 + $0x50] sm:$0xff]
    %v350 = vld [vmem:[#allocation12 + $0x58] sm:$0xff]
    %v351 = vld [vmem:[#allocation12 + $0x60] sm:$0xf]
    %v352 = vld [vmem:[#allocation12 + $0x64] sm:$0xff]
    %v353 = vld [vmem:[#allocation12 + $0x6c] sm:$0xff]
    %v354 = vld [vmem:[#allocation12 + $0x74] sm:$0xf]
    %v355 = vld [vmem:[#allocation12 + $0x78] sm:$0xff]
    %v356 = vld [vmem:[#allocation12 + $0x80] sm:$0xff]
    %v357 = vld [vmem:[#allocation12 + $0x88] sm:$0xf]
    %v358 = vld [vmem:[#allocation12 + $0x8c] sm:$0xff]
    %v359 = vld [vmem:[#allocation12 + $0x94] sm:$0xff]
    %v360 = vld [vmem:[#allocation12 + $0x9c] sm:$0xf]
    %v361 = vld [vmem:[#allocation12 + $0xa0] sm:$0xff]
    %v362 = vld [vmem:[#allocation12 + $0xa8] sm:$0xff]
    %v363 = vld [vmem:[#allocation12 + $0xb0] sm:$0xf]
    %v364 = vld [vmem:[#allocation12 + $0xb4] sm:$0xff]
    %v365 = vld [vmem:[#allocation12 + $0xbc] sm:$0xff]
    %v366 = vld [vmem:[#allocation12 + $0xc4] sm:$0xf]
    %v367 = vld [vmem:[#allocation12 + $0xc8] sm:$0xff]
    %v368 = vld [vmem:[#allocation12 + $0xd0] sm:$0xff]
    %v369 = vld [vmem:[#allocation12 + $0xd8] sm:$0xf]
    %v370 = vld [vmem:[#allocation12 + $0xdc] sm:$0xff]
    %v371 = vld [vmem:[#allocation12 + $0xe4] sm:$0xff]
    %v372 = vld [vmem:[#allocation12 + $0xec] sm:$0xf]
    %v373 = vld [vmem:[#allocation12 + $0xf0] sm:$0xff]
    %v374 = vld [vmem:[#allocation12 + $0xf8] sm:$0xff]
    %v375 = vld [vmem:[#allocation12 + $0x100] sm:$0xf]
    %v376 = vld [vmem:[#allocation12 + $0x104] sm:$0xff]
    %v377 = vld [vmem:[#allocation12 + $0x10c] sm:$0xff]
    %v378 = vld [vmem:[#allocation12 + $0x114] sm:$0xf]
    %v379 = vld [vmem:[#allocation12 + $0x118] sm:$0xff]
    %v380 = vld [vmem:[#allocation12 + $0x120] sm:$0xff]
    %v381 = vld [vmem:[#allocation12 + $0x128] sm:$0xf]
    %v382 = vld [vmem:[#allocation12 + $0x12c] sm:$0xff]
    %v383 = vld [vmem:[#allocation12 + $0x134] sm:$0xff]
    %v384 = vld [vmem:[#allocation12 + $0x13c] sm:$0xf]
    %v385 = vld [vmem:[#allocation14] sm:$0x1f]
    %v387 = vlaneseq
    %v388 = vshrl.u32 %v387, 7
    %v389 = vsub.s32 0, %v388
    %v390 = vrot.slane %v385, %v389
    %v391 = vlaneseq
    %v392 = vshrl.u32 %v391, 7
    %v393 = vsub.s32 1, %v392
    %v394 = vrot.slane %v385, %v393
    %v395 = vlaneseq
    %v396 = vshrl.u32 %v395, 7
    %v397 = vsub.s32 2, %v396
    %v398 = vrot.slane %v385, %v397
    %v399 = vlaneseq
    %v400 = vshrl.u32 %v399, 7
    %v401 = vsub.s32 3, %v400
    %v402 = vrot.slane %v385, %v401
    %v403 = vlaneseq
    %v404 = vshrl.u32 %v403, 7
    %v405 = vsub.s32 4, %v404
    %v406 = vrot.slane %v385, %v405
    %v460 = vunpack.c.l.b16 %v337
    %v461 = vunpack.c.h.b16 %v337
    %v462 = vunpack.c.l.b16 %v338
    %v463 = vunpack.c.h.b16 %v338
    %v464 = vunpack.c.l.b16 %v339
    %v465 = vunpack.c.l.b16 %v340
    %v466 = vunpack.c.h.b16 %v340
    %v467 = vunpack.c.l.b16 %v341
    %v468 = vunpack.c.h.b16 %v341
    %v469 = vunpack.c.l.b16 %v342
    %v470 = vunpack.c.l.b16 %v343
    %v471 = vunpack.c.h.b16 %v343
    %v472 = vunpack.c.l.b16 %v344
    %v473 = vunpack.c.h.b16 %v344
    %v474 = vunpack.c.l.b16 %v345
    %v475 = vunpack.c.l.b16 %v346
    %v476 = vunpack.c.h.b16 %v346
    %v477 = vunpack.c.l.b16 %v347
    %v478 = vunpack.c.h.b16 %v347
    %v479 = vunpack.c.l.b16 %v348
    %v480 = vunpack.c.l.b16 %v349
    %v481 = vunpack.c.h.b16 %v349
    %v482 = vunpack.c.l.b16 %v350
    %v483 = vunpack.c.h.b16 %v350
    %v484 = vunpack.c.l.b16 %v351
    %v485 = vunpack.c.l.b16 %v352
    %v486 = vunpack.c.h.b16 %v352
    %v487 = vunpack.c.l.b16 %v353
    %v488 = vunpack.c.h.b16 %v353
    %v489 = vunpack.c.l.b16 %v354
    %v490 = vunpack.c.l.b16 %v355
    %v491 = vunpack.c.h.b16 %v355
    %v492 = vunpack.c.l.b16 %v356
    %v493 = vunpack.c.h.b16 %v356
    %v494 = vunpack.c.l.b16 %v357
    %v495 = vunpack.c.l.b16 %v358
    %v496 = vunpack.c.h.b16 %v358
    %v497 = vunpack.c.l.b16 %v359
    %v498 = vunpack.c.h.b16 %v359
    %v499 = vunpack.c.l.b16 %v360
    %v500 = vunpack.c.l.b16 %v361
    %v501 = vunpack.c.h.b16 %v361
    %v502 = vunpack.c.l.b16 %v362
    %v503 = vunpack.c.h.b16 %v362
    %v504 = vunpack.c.l.b16 %v363
    %v505 = vunpack.c.l.b16 %v364
    %v506 = vunpack.c.h.b16 %v364
    %v507 = vunpack.c.l.b16 %v365
    %v508 = vunpack.c.h.b16 %v365
    %v509 = vunpack.c.l.b16 %v366
    %v510 = vunpack.c.l.b16 %v367
    %v511 = vunpack.c.h.b16 %v367
    %v512 = vunpack.c.l.b16 %v368
    %v513 = vunpack.c.h.b16 %v368
    %v514 = vunpack.c.l.b16 %v369
    %v515 = vunpack.c.l.b16 %v370
    %v516 = vunpack.c.h.b16 %v370
    %v517 = vunpack.c.l.b16 %v371
    %v518 = vunpack.c.h.b16 %v371
    %v519 = vunpack.c.l.b16 %v372
    %v520 = vunpack.c.l.b16 %v373
    %v521 = vunpack.c.h.b16 %v373
    %v522 = vunpack.c.l.b16 %v374
    %v523 = vunpack.c.h.b16 %v374
    %v524 = vunpack.c.l.b16 %v375
    %v525 = vunpack.c.l.b16 %v376
    %v526 = vunpack.c.h.b16 %v376
    %v527 = vunpack.c.l.b16 %v377
    %v528 = vunpack.c.h.b16 %v377
    %v529 = vunpack.c.l.b16 %v378
    %v530 = vunpack.c.l.b16 %v379
    %v531 = vunpack.c.h.b16 %v379
    %v532 = vunpack.c.l.b16 %v380
    %v533 = vunpack.c.h.b16 %v380
    %v534 = vunpack.c.l.b16 %v381
    %v535 = vunpack.c.l.b16 %v382
    %v536 = vunpack.c.h.b16 %v382
    %v537 = vunpack.c.l.b16 %v383
    %v538 = vunpack.c.h.b16 %v383
    %v539 = vunpack.c.l.b16 %v384
    %v540 = vpack.c.b16 %v465, %v460
    %v541 = vpack.c.b16 %v466, %v461
    %v542 = vpack.c.b16 %v467, %v462
    %v543 = vpack.c.b16 %v468, %v463
    %v544 = vpack.c.b16 %v469, %v464
    %v545 = vpack.c.b16 %v475, %v470
    %v546 = vpack.c.b16 %v476, %v471
    %v547 = vpack.c.b16 %v477, %v472
    %v548 = vpack.c.b16 %v478, %v473
    %v549 = vpack.c.b16 %v479, %v474
    %v550 = vpack.c.b16 %v485, %v480
    %v551 = vpack.c.b16 %v486, %v481
    %v552 = vpack.c.b16 %v487, %v482
    %v553 = vpack.c.b16 %v488, %v483
    %v554 = vpack.c.b16 %v489, %v484
    %v555 = vpack.c.b16 %v495, %v490
    %v556 = vpack.c.b16 %v496, %v491
    %v557 = vpack.c.b16 %v497, %v492
    %v558 = vpack.c.b16 %v498, %v493
    %v559 = vpack.c.b16 %v499, %v494
    %v560 = vpack.c.b16 %v505, %v500
    %v561 = vpack.c.b16 %v506, %v501
    %v562 = vpack.c.b16 %v507, %v502
    %v563 = vpack.c.b16 %v508, %v503
    %v564 = vpack.c.b16 %v509, %v504
    %v565 = vpack.c.b16 %v515, %v510
    %v566 = vpack.c.b16 %v516, %v511
    %v567 = vpack.c.b16 %v517, %v512
    %v568 = vpack.c.b16 %v518, %v513
    %v569 = vpack.c.b16 %v519, %v514
    %v570 = vpack.c.b16 %v525, %v520
    %v571 = vpack.c.b16 %v526, %v521
    %v572 = vpack.c.b16 %v527, %v522
    %v573 = vpack.c.b16 %v528, %v523
    %v574 = vpack.c.b16 %v529, %v524
    %v575 = vpack.c.b16 %v535, %v530
    %v576 = vpack.c.b16 %v536, %v531
    %v577 = vpack.c.b16 %v537, %v532
    %v578 = vpack.c.b16 %v538, %v533
    %v579 = vpack.c.b16 %v539, %v534
    %620 = vmatprep.subr.bf16.mxu0 %v541
    %621 = vmatpush1.bf16.msra.mxu0 %v540
    %622 = vmatprep.subr.bf16.mxu0 %v546
    %623 = vmatpush1.bf16.msra.mxu0 %v545
    %624 = vmatprep.subr.bf16.mxu0 %v551
    %625 = vmatpush1.bf16.msra.mxu0 %v550
    %626 = vmatprep.subr.bf16.mxu0 %v556
    %627 = vmatpush1.bf16.msra.mxu0 %v555
    %628 = vmatprep.subr.bf16.mxu0 %v561
    %629 = vmatpush1.bf16.msra.mxu0 %v560
    %630 = vmatprep.subr.bf16.mxu0 %v566
    %631 = vmatpush1.bf16.msra.mxu0 %v565
    %632 = vmatprep.subr.bf16.mxu0 %v571
    %633 = vmatpush1.bf16.msra.mxu0 %v570
    %634 = vmatprep.subr.bf16.mxu0 %v576
    %635 = vmatpush1.bf16.msra.mxu0 %v575
    %636 = vmatprep.subr.bf16.mxu0 0
    %637 = vmatpush1.bf16.msra.mxu0 0
    %638 = vmatprep.subr.bf16.mxu0 0
    %639 = vmatpush1.bf16.msra.mxu0 0
    %640 = vmatprep.subr.bf16.mxu0 0
    %641 = vmatpush1.bf16.msra.mxu0 0
    %642 = vmatprep.subr.bf16.mxu0 0
    %643 = vmatpush1.bf16.msra.mxu0 0
    %644 = vmatprep.subr.bf16.mxu0 0
    %645 = vmatpush1.bf16.msra.mxu0 0
    %646 = vmatprep.subr.bf16.mxu0 0
    %647 = vmatpush1.bf16.msra.mxu0 0
    %648 = vmatprep.subr.bf16.mxu0 0
    %649 = vmatpush1.bf16.msra.mxu0 0
    %650 = vmatprep.subr.bf16.mxu0 0
    %651 = vmatpush1.bf16.msra.mxu0 0
    %652 = vmatprep.mubr.bf16.mxu0 0
    %653 = vmatmul.mubr.bf16.gmra.mrb[0].mxu0 %v336
    %v654 = vpop.f32.mrb[0].mxu0
    %v655 = vadd.f32 %v390, %v654
    %v656 = vpop.f32.mrb[0].mxu0
    %v657 = vadd.f32 %v394, %v656
    %v658 = vpop.f32.mrb[0].mxu0
    %v659 = vpop.f32.mrb[0].mxu0
    %660 = vdwg.mxu0
    %661 = vmatprep.subr.bf16.mxu0 %v543
    %662 = vmatpush1.bf16.msra.mxu0 %v542
    %663 = vmatprep.subr.bf16.mxu0 %v548
    %664 = vmatpush1.bf16.msra.mxu0 %v547
    %665 = vmatprep.subr.bf16.mxu0 %v553
    %666 = vmatpush1.bf16.msra.mxu0 %v552
    %667 = vmatprep.subr.bf16.mxu0 %v558
    %668 = vmatpush1.bf16.msra.mxu0 %v557
    %669 = vmatprep.subr.bf16.mxu0 %v563
    %670 = vmatpush1.bf16.msra.mxu0 %v562
    %671 = vmatprep.subr.bf16.mxu0 %v568
    %672 = vmatpush1.bf16.msra.mxu0 %v567
    %673 = vmatprep.subr.bf16.mxu0 %v573
    %674 = vmatpush1.bf16.msra.mxu0 %v572
    %675 = vmatprep.subr.bf16.mxu0 %v578
    %676 = vmatpush1.bf16.msra.mxu0 %v577
    %677 = vmatprep.subr.bf16.mxu0 0
    %678 = vmatpush1.bf16.msra.mxu0 0
    %679 = vmatprep.subr.bf16.mxu0 0
    %680 = vmatpush1.bf16.msra.mxu0 0
    %681 = vmatprep.subr.bf16.mxu0 0
    %682 = vmatpush1.bf16.msra.mxu0 0
    %683 = vmatprep.subr.bf16.mxu0 0
    %684 = vmatpush1.bf16.msra.mxu0 0
    %685 = vmatprep.subr.bf16.mxu0 0
    %686 = vmatpush1.bf16.msra.mxu0 0
    %687 = vmatprep.subr.bf16.mxu0 0
    %688 = vmatpush1.bf16.msra.mxu0 0
    %689 = vmatprep.subr.bf16.mxu0 0
    %690 = vmatpush1.bf16.msra.mxu0 0
    %691 = vmatprep.subr.bf16.mxu0 0
    %692 = vmatpush1.bf16.msra.mxu0 0
    %693 = vmatprep.mubr.bf16.mxu0 0
    %694 = vmatmul.mubr.bf16.gmra.mrb[0].mxu0 %v336
    %v695 = vpop.f32.mrb[0].mxu0
    %v696 = vadd.f32 %v398, %v695
    %v697 = vpop.f32.mrb[0].mxu0
    %v698 = vadd.f32 %v402, %v697
    %v699 = vpop.f32.mrb[0].mxu0
    %v700 = vpop.f32.mrb[0].mxu0
    %701 = vdwg.mxu0
    %702 = vmatprep.subr.bf16.mxu0 0
    %703 = vmatpush1.bf16.msra.mxu0 %v544
    %704 = vmatprep.subr.bf16.mxu0 0
    %705 = vmatpush1.bf16.msra.mxu0 %v549
    %706 = vmatprep.subr.bf16.mxu0 0
    %707 = vmatpush1.bf16.msra.mxu0 %v554
    %708 = vmatprep.subr.bf16.mxu0 0
    %709 = vmatpush1.bf16.msra.mxu0 %v559
    %710 = vmatprep.subr.bf16.mxu0 0
    %711 = vmatpush1.bf16.msra.mxu0 %v564
    %712 = vmatprep.subr.bf16.mxu0 0
    %713 = vmatpush1.bf16.msra.mxu0 %v569
    %714 = vmatprep.subr.bf16.mxu0 0
    %715 = vmatpush1.bf16.msra.mxu0 %v574
    %716 = vmatprep.subr.bf16.mxu0 0
    %717 = vmatpush1.bf16.msra.mxu0 %v579
    %718 = vmatprep.subr.bf16.mxu0 0
    %719 = vmatpush1.bf16.msra.mxu0 0
    %720 = vmatprep.subr.bf16.mxu0 0
    %721 = vmatpush1.bf16.msra.mxu0 0
    %722 = vmatprep.subr.bf16.mxu0 0
    %723 = vmatpush1.bf16.msra.mxu0 0
    %724 = vmatprep.subr.bf16.mxu0 0
    %725 = vmatpush1.bf16.msra.mxu0 0
    %726 = vmatprep.subr.bf16.mxu0 0
    %727 = vmatpush1.bf16.msra.mxu0 0
    %728 = vmatprep.subr.bf16.mxu0 0
    %729 = vmatpush1.bf16.msra.mxu0 0
    %730 = vmatprep.subr.bf16.mxu0 0
    %731 = vmatpush1.bf16.msra.mxu0 0
    %732 = vmatprep.subr.bf16.mxu0 0
    %733 = vmatpush1.bf16.msra.mxu0 0
    %734 = vmatprep.mubr.bf16.mxu0 0
    %735 = vmatmul.mubr.bf16.gmra.mrb[0].mxu0 %v336
    %v736 = vpop.f32.mrb[0].mxu0
    %v737 = vadd.f32 %v406, %v736
    %v738 = vpop.f32.mrb[0].mxu0
    %v739 = vpop.f32.mrb[0].mxu0
    %v740 = vpop.f32.mrb[0].mxu0
    %741 = vdwg.mxu0
    %vm742 = vcmp.gt.f32.partialorder %v655, 0.0
    %vm743 = vcmp.gt.f32.partialorder %v657, 0.0
    %vm744 = vcmp.gt.f32.partialorder %v696, 0.0
    %vm745 = vcmp.gt.f32.partialorder %v698, 0.0
    %vm746 = vcmp.gt.f32.partialorder %v737, 0.0
    %v747 = vmin.f32 %v655, 0.0
    %v748 = vmin.f32 %v657, 0.0
    %v749 = vmin.f32 %v696, 0.0
    %v750 = vmin.f32 %v698, 0.0
    %v751 = vmin.f32 %v737, 0.0
    %v752 = vmul.f32 %v747, 1.442695
    %v753 = vpow.pop %v752
    %v754 = vmul.f32 %v748, 1.442695
    %v755 = vpow.pop %v754
    %v756 = vmul.f32 %v749, 1.442695
    %v757 = vpow.pop %v756
    %v758 = vmul.f32 %v750, 1.442695
    %v759 = vpow.pop %v758
    %v760 = vmul.f32 %v751, 1.442695
    %v761 = vpow.pop %v760
    %v762 = vsub.f32 %v753, 1.0
    %v763 = vsub.f32 %v755, 1.0
    %v764 = vsub.f32 %v757, 1.0
    %v765 = vsub.f32 %v759, 1.0
    %v766 = vsub.f32 %v761, 1.0
    %v767 = vsel %vm742, %v655, %v762
    %v768 = vsel %vm743, %v657, %v763
    %v769 = vsel %vm744, %v696, %v764
    %v770 = vsel %vm745, %v698, %v765
    %v771 = vsel %vm746, %v737, %v766
    %v772 = vpack.c.bf16 %v767, %v767
    %v773 = vpack.c.bf16 %v768, %v768
    %v774 = vpack.c.bf16 %v769, %v769
    %v775 = vpack.c.bf16 %v770, %v770
    %v776 = vpack.c.bf16 %v771, %v771
    %v777 = vld [vmem:[#allocation15] sm:$0xff]
    %v778 = vld [vmem:[#allocation15 + $0x8] sm:$0xff]
    %v779 = vld [vmem:[#allocation15 + $0x10] sm:$0xff]
    %v780 = vld [vmem:[#allocation15 + $0x18] sm:$0xff]
    %v781 = vld [vmem:[#allocation15 + $0x20] sm:$0xff]
    %v782 = vld [vmem:[#allocation15 + $0x28] sm:$0xff]
    %v783 = vld [vmem:[#allocation15 + $0x30] sm:$0xff]
    %v784 = vld [vmem:[#allocation15 + $0x38] sm:$0xff]
    %v785 = vld [vmem:[#allocation15 + $0x40] sm:$0xff]
    %v786 = vld [vmem:[#allocation15 + $0x48] sm:$0xff]
    %v787 = vld [vmem:[#allocation15 + $0x50] sm:$0xff]
    %v788 = vld [vmem:[#allocation15 + $0x58] sm:$0xff]
    %v789 = vld [vmem:[#allocation15 + $0x60] sm:$0xff]
    %v790 = vld [vmem:[#allocation15 + $0x68] sm:$0xff]
    %v791 = vld [vmem:[#allocation15 + $0x70] sm:$0xff]
    %v792 = vld [vmem:[#allocation15 + $0x78] sm:$0xff]
    %v793 = vld [vmem:[#allocation15 + $0x80] sm:$0xff]
    %v794 = vld [vmem:[#allocation15 + $0x88] sm:$0xff]
    %v795 = vld [vmem:[#allocation15 + $0x90] sm:$0xff]
    %v796 = vld [vmem:[#allocation15 + $0x98] sm:$0xff]
    %v797 = vld [vmem:[#allocation15 + $0xa0] sm:$0xff]
    %v798 = vld [vmem:[#allocation15 + $0xa8] sm:$0xff]
    %v799 = vld [vmem:[#allocation15 + $0xb0] sm:$0xff]
    %v800 = vld [vmem:[#allocation15 + $0xb8] sm:$0xff]
    %v801 = vld [vmem:[#allocation15 + $0xc0] sm:$0xff]
    %v802 = vld [vmem:[#allocation15 + $0xc8] sm:$0xff]
    %v803 = vld [vmem:[#allocation15 + $0xd0] sm:$0xff]
    %v804 = vld [vmem:[#allocation15 + $0xd8] sm:$0xff]
    %v805 = vld [vmem:[#allocation15 + $0xe0] sm:$0xff]
    %v806 = vld [vmem:[#allocation15 + $0xe8] sm:$0xff]
    %v807 = vld [vmem:[#allocation15 + $0xf0] sm:$0xff]
    %v808 = vld [vmem:[#allocation15 + $0xf8] sm:$0xff]
    %v809 = vld [vmem:[#allocation15 + $0x100] sm:$0xff]
    %v810 = vld [vmem:[#allocation15 + $0x108] sm:$0xff]
    %v811 = vld [vmem:[#allocation15 + $0x110] sm:$0xff]
    %v812 = vld [vmem:[#allocation15 + $0x118] sm:$0xff]
    %v813 = vld [vmem:[#allocation15 + $0x120] sm:$0xff]
    %v814 = vld [vmem:[#allocation15 + $0x128] sm:$0xff]
    %v815 = vld [vmem:[#allocation15 + $0x130] sm:$0xff]
    %v816 = vld [vmem:[#allocation15 + $0x138] sm:$0xff]
    %v817 = vld [vmem:[#allocation15 + $0x140] sm:$0xff]
    %v818 = vld [vmem:[#allocation15 + $0x148] sm:$0xff]
    %v819 = vld [vmem:[#allocation15 + $0x150] sm:$0xff]
    %v820 = vld [vmem:[#allocation15 + $0x158] sm:$0xff]
    %v821 = vld [vmem:[#allocation15 + $0x160] sm:$0xff]
    %v822 = vld [vmem:[#allocation15 + $0x168] sm:$0xff]
    %v823 = vld [vmem:[#allocation15 + $0x170] sm:$0xff]
    %v824 = vld [vmem:[#allocation15 + $0x178] sm:$0xff]
    %v825 = vld [vmem:[#allocation15 + $0x180] sm:$0xff]
    %v826 = vld [vmem:[#allocation15 + $0x188] sm:$0xff]
    %v827 = vld [vmem:[#allocation15 + $0x190] sm:$0xff]
    %v828 = vld [vmem:[#allocation15 + $0x198] sm:$0xff]
    %v829 = vld [vmem:[#allocation15 + $0x1a0] sm:$0xff]
    %v830 = vld [vmem:[#allocation15 + $0x1a8] sm:$0xff]
    %v831 = vld [vmem:[#allocation15 + $0x1b0] sm:$0xff]
    %v832 = vld [vmem:[#allocation15 + $0x1b8] sm:$0xff]
    %v833 = vld [vmem:[#allocation15 + $0x1c0] sm:$0xff]
    %v834 = vld [vmem:[#allocation15 + $0x1c8] sm:$0xff]
    %v835 = vld [vmem:[#allocation15 + $0x1d0] sm:$0xff]
    %v836 = vld [vmem:[#allocation15 + $0x1d8] sm:$0xff]
    %v837 = vld [vmem:[#allocation15 + $0x1e0] sm:$0xff]
    %v838 = vld [vmem:[#allocation15 + $0x1e8] sm:$0xff]
    %v839 = vld [vmem:[#allocation15 + $0x1f0] sm:$0xff]
    %v840 = vld [vmem:[#allocation15 + $0x1f8] sm:$0xff]
    %v841 = vld [vmem:[#allocation15 + $0x200] sm:$0xff]
    %v842 = vld [vmem:[#allocation15 + $0x208] sm:$0xff]
    %v843 = vld [vmem:[#allocation15 + $0x210] sm:$0xff]
    %v844 = vld [vmem:[#allocation15 + $0x218] sm:$0xff]
    %v845 = vld [vmem:[#allocation15 + $0x220] sm:$0xff]
    %v846 = vld [vmem:[#allocation15 + $0x228] sm:$0xff]
    %v847 = vld [vmem:[#allocation15 + $0x230] sm:$0xff]
    %v848 = vld [vmem:[#allocation15 + $0x238] sm:$0xff]
    %v849 = vld [vmem:[#allocation15 + $0x240] sm:$0xff]
    %v850 = vld [vmem:[#allocation15 + $0x248] sm:$0xff]
    %v851 = vld [vmem:[#allocation15 + $0x250] sm:$0xff]
    %v852 = vld [vmem:[#allocation15 + $0x258] sm:$0xff]
    %v853 = vld [vmem:[#allocation15 + $0x260] sm:$0xff]
    %v854 = vld [vmem:[#allocation15 + $0x268] sm:$0xff]
    %v855 = vld [vmem:[#allocation15 + $0x270] sm:$0xff]
    %v856 = vld [vmem:[#allocation15 + $0x278] sm:$0xff]
    %v857 = vld [vmem:[#allocation15 + $0x280] sm:$0xff]
    %v858 = vld [vmem:[#allocation15 + $0x288] sm:$0xff]
    %v859 = vld [vmem:[#allocation15 + $0x290] sm:$0xff]
    %v860 = vld [vmem:[#allocation15 + $0x298] sm:$0xff]
    %v861 = vld [vmem:[#allocation15 + $0x2a0] sm:$0xff]
    %v862 = vld [vmem:[#allocation15 + $0x2a8] sm:$0xff]
    %v863 = vld [vmem:[#allocation15 + $0x2b0] sm:$0xff]
    %v864 = vld [vmem:[#allocation15 + $0x2b8] sm:$0xff]
    %v865 = vld [vmem:[#allocation15 + $0x2c0] sm:$0xff]
    %v866 = vld [vmem:[#allocation15 + $0x2c8] sm:$0xff]
    %v867 = vld [vmem:[#allocation15 + $0x2d0] sm:$0xff]
    %v868 = vld [vmem:[#allocation15 + $0x2d8] sm:$0xff]
    %v869 = vld [vmem:[#allocation15 + $0x2e0] sm:$0xff]
    %v870 = vld [vmem:[#allocation15 + $0x2e8] sm:$0xff]
    %v871 = vld [vmem:[#allocation15 + $0x2f0] sm:$0xff]
    %v872 = vld [vmem:[#allocation15 + $0x2f8] sm:$0xff]
    %v873 = vld [vmem:[#allocation15 + $0x300] sm:$0xff]
    %v874 = vld [vmem:[#allocation15 + $0x308] sm:$0xff]
    %v875 = vld [vmem:[#allocation15 + $0x310] sm:$0xff]
    %v876 = vld [vmem:[#allocation15 + $0x318] sm:$0xff]
    %v877 = vld [vmem:[#allocation15 + $0x320] sm:$0xff]
    %v878 = vld [vmem:[#allocation15 + $0x328] sm:$0xff]
    %v879 = vld [vmem:[#allocation15 + $0x330] sm:$0xff]
    %v880 = vld [vmem:[#allocation15 + $0x338] sm:$0xff]
    %v881 = vld [vmem:[#allocation15 + $0x340] sm:$0xff]
    %v882 = vld [vmem:[#allocation15 + $0x348] sm:$0xff]
    %v883 = vld [vmem:[#allocation15 + $0x350] sm:$0xff]
    %v884 = vld [vmem:[#allocation15 + $0x358] sm:$0xff]
    %v885 = vld [vmem:[#allocation15 + $0x360] sm:$0xff]
    %v886 = vld [vmem:[#allocation15 + $0x368] sm:$0xff]
    %v887 = vld [vmem:[#allocation15 + $0x370] sm:$0xff]
    %v888 = vld [vmem:[#allocation15 + $0x378] sm:$0xff]
    %v889 = vld [vmem:[#allocation15 + $0x380] sm:$0xff]
    %v890 = vld [vmem:[#allocation15 + $0x388] sm:$0xff]
    %v891 = vld [vmem:[#allocation15 + $0x390] sm:$0xff]
    %v892 = vld [vmem:[#allocation15 + $0x398] sm:$0xff]
    %v893 = vld [vmem:[#allocation15 + $0x3a0] sm:$0xff]
    %v894 = vld [vmem:[#allocation15 + $0x3a8] sm:$0xff]
    %v895 = vld [vmem:[#allocation15 + $0x3b0] sm:$0xff]
    %v896 = vld [vmem:[#allocation15 + $0x3b8] sm:$0xff]
    %v897 = vld [vmem:[#allocation15 + $0x3c0] sm:$0xff]
    %v898 = vld [vmem:[#allocation15 + $0x3c8] sm:$0xff]
    %v899 = vld [vmem:[#allocation15 + $0x3d0] sm:$0xff]
    %v900 = vld [vmem:[#allocation15 + $0x3d8] sm:$0xff]
    %v901 = vld [vmem:[#allocation15 + $0x3e0] sm:$0xff]
    %v902 = vld [vmem:[#allocation15 + $0x3e8] sm:$0xff]
    %v903 = vld [vmem:[#allocation15 + $0x3f0] sm:$0xff]
    %v904 = vld [vmem:[#allocation15 + $0x3f8] sm:$0xff]
    %v905 = vld [vmem:[#allocation15 + $0x400] sm:$0xff]
    %v906 = vld [vmem:[#allocation15 + $0x408] sm:$0xff]
    %v907 = vld [vmem:[#allocation15 + $0x410] sm:$0xff]
    %v908 = vld [vmem:[#allocation15 + $0x418] sm:$0xff]
    %v909 = vld [vmem:[#allocation15 + $0x420] sm:$0xff]
    %v910 = vld [vmem:[#allocation15 + $0x428] sm:$0xff]
    %v911 = vld [vmem:[#allocation15 + $0x430] sm:$0xff]
    %v912 = vld [vmem:[#allocation15 + $0x438] sm:$0xff]
    %v913 = vld [vmem:[#allocation15 + $0x440] sm:$0xff]
    %v914 = vld [vmem:[#allocation15 + $0x448] sm:$0xff]
    %v915 = vld [vmem:[#allocation15 + $0x450] sm:$0xff]
    %v916 = vld [vmem:[#allocation15 + $0x458] sm:$0xff]
    %v917 = vld [vmem:[#allocation15 + $0x460] sm:$0xff]
    %v918 = vld [vmem:[#allocation15 + $0x468] sm:$0xff]
    %v919 = vld [vmem:[#allocation15 + $0x470] sm:$0xff]
    %v920 = vld [vmem:[#allocation15 + $0x478] sm:$0xff]
    %v921 = vld [vmem:[#allocation15 + $0x480] sm:$0xff]
    %v922 = vld [vmem:[#allocation15 + $0x488] sm:$0xff]
    %v923 = vld [vmem:[#allocation15 + $0x490] sm:$0xff]
    %v924 = vld [vmem:[#allocation15 + $0x498] sm:$0xff]
    %v925 = vld [vmem:[#allocation15 + $0x4a0] sm:$0xff]
    %v926 = vld [vmem:[#allocation15 + $0x4a8] sm:$0xff]
    %v927 = vld [vmem:[#allocation15 + $0x4b0] sm:$0xff]
    %v928 = vld [vmem:[#allocation15 + $0x4b8] sm:$0xff]
    %v929 = vld [vmem:[#allocation15 + $0x4c0] sm:$0xff]
    %v930 = vld [vmem:[#allocation15 + $0x4c8] sm:$0xff]
    %v931 = vld [vmem:[#allocation15 + $0x4d0] sm:$0xff]
    %v932 = vld [vmem:[#allocation15 + $0x4d8] sm:$0xff]
    %v933 = vld [vmem:[#allocation15 + $0x4e0] sm:$0xff]
    %v934 = vld [vmem:[#allocation15 + $0x4e8] sm:$0xff]
    %v935 = vld [vmem:[#allocation15 + $0x4f0] sm:$0xff]
    %v936 = vld [vmem:[#allocation15 + $0x4f8] sm:$0xff]
    %v937 = vld [vmem:[#allocation15 + $0x500] sm:$0xff]
    %v938 = vld [vmem:[#allocation15 + $0x508] sm:$0xff]
    %v939 = vld [vmem:[#allocation15 + $0x510] sm:$0xff]
    %v940 = vld [vmem:[#allocation15 + $0x518] sm:$0xff]
    %v941 = vld [vmem:[#allocation15 + $0x520] sm:$0xff]
    %v942 = vld [vmem:[#allocation15 + $0x528] sm:$0xff]
    %v943 = vld [vmem:[#allocation15 + $0x530] sm:$0xff]
    %v944 = vld [vmem:[#allocation15 + $0x538] sm:$0xff]
    %v945 = vld [vmem:[#allocation15 + $0x540] sm:$0xff]
    %v946 = vld [vmem:[#allocation15 + $0x548] sm:$0xff]
    %v947 = vld [vmem:[#allocation15 + $0x550] sm:$0xff]
    %v948 = vld [vmem:[#allocation15 + $0x558] sm:$0xff]
    %v949 = vld [vmem:[#allocation15 + $0x560] sm:$0xff]
    %v950 = vld [vmem:[#allocation15 + $0x568] sm:$0xff]
    %v951 = vld [vmem:[#allocation15 + $0x570] sm:$0xff]
    %v952 = vld [vmem:[#allocation15 + $0x578] sm:$0xff]
    %v953 = vld [vmem:[#allocation15 + $0x580] sm:$0xff]
    %v954 = vld [vmem:[#allocation15 + $0x588] sm:$0xff]
    %v955 = vld [vmem:[#allocation15 + $0x590] sm:$0xff]
    %v956 = vld [vmem:[#allocation15 + $0x598] sm:$0xff]
    %v957 = vld [vmem:[#allocation15 + $0x5a0] sm:$0xff]
    %v958 = vld [vmem:[#allocation15 + $0x5a8] sm:$0xff]
    %v959 = vld [vmem:[#allocation15 + $0x5b0] sm:$0xff]
    %v960 = vld [vmem:[#allocation15 + $0x5b8] sm:$0xff]
    %v961 = vld [vmem:[#allocation15 + $0x5c0] sm:$0xff]
    %v962 = vld [vmem:[#allocation15 + $0x5c8] sm:$0xff]
    %v963 = vld [vmem:[#allocation15 + $0x5d0] sm:$0xff]
    %v964 = vld [vmem:[#allocation15 + $0x5d8] sm:$0xff]
    %v965 = vld [vmem:[#allocation15 + $0x5e0] sm:$0xff]
    %v966 = vld [vmem:[#allocation15 + $0x5e8] sm:$0xff]
    %v967 = vld [vmem:[#allocation15 + $0x5f0] sm:$0xff]
    %v968 = vld [vmem:[#allocation15 + $0x5f8] sm:$0xff]
    %v969 = vld [vmem:[#allocation15 + $0x600] sm:$0xff]
    %v970 = vld [vmem:[#allocation15 + $0x608] sm:$0xff]
    %v971 = vld [vmem:[#allocation15 + $0x610] sm:$0xff]
    %v972 = vld [vmem:[#allocation15 + $0x618] sm:$0xff]
    %v973 = vld [vmem:[#allocation15 + $0x620] sm:$0xff]
    %v974 = vld [vmem:[#allocation15 + $0x628] sm:$0xff]
    %v975 = vld [vmem:[#allocation15 + $0x630] sm:$0xff]
    %v976 = vld [vmem:[#allocation15 + $0x638] sm:$0xff]
    %v977 = vld [vmem:[#allocation15 + $0x640] sm:$0xff]
    %v978 = vld [vmem:[#allocation15 + $0x648] sm:$0xff]
    %v979 = vld [vmem:[#allocation15 + $0x650] sm:$0xff]
    %v980 = vld [vmem:[#allocation15 + $0x658] sm:$0xff]
    %v981 = vld [vmem:[#allocation15 + $0x660] sm:$0xff]
    %v982 = vld [vmem:[#allocation15 + $0x668] sm:$0xff]
    %v983 = vld [vmem:[#allocation15 + $0x670] sm:$0xff]
    %v984 = vld [vmem:[#allocation15 + $0x678] sm:$0xff]
    %v985 = vld [vmem:[#allocation15 + $0x680] sm:$0xff]
    %v986 = vld [vmem:[#allocation15 + $0x688] sm:$0xff]
    %v987 = vld [vmem:[#allocation15 + $0x690] sm:$0xff]
    %v988 = vld [vmem:[#allocation15 + $0x698] sm:$0xff]
    %v989 = vld [vmem:[#allocation15 + $0x6a0] sm:$0xff]
    %v990 = vld [vmem:[#allocation15 + $0x6a8] sm:$0xff]
    %v991 = vld [vmem:[#allocation15 + $0x6b0] sm:$0xff]
    %v992 = vld [vmem:[#allocation15 + $0x6b8] sm:$0xff]
    %v993 = vld [vmem:[#allocation15 + $0x6c0] sm:$0xff]
    %v994 = vld [vmem:[#allocation15 + $0x6c8] sm:$0xff]
    %v995 = vld [vmem:[#allocation15 + $0x6d0] sm:$0xff]
    %v996 = vld [vmem:[#allocation15 + $0x6d8] sm:$0xff]
    %v997 = vld [vmem:[#allocation15 + $0x6e0] sm:$0xff]
    %v998 = vld [vmem:[#allocation15 + $0x6e8] sm:$0xff]
    %v999 = vld [vmem:[#allocation15 + $0x6f0] sm:$0xff]
    %v1000 = vld [vmem:[#allocation15 + $0x6f8] sm:$0xff]
    %v1001 = vld [vmem:[#allocation15 + $0x700] sm:$0xff]
    %v1002 = vld [vmem:[#allocation15 + $0x708] sm:$0xff]
    %v1003 = vld [vmem:[#allocation15 + $0x710] sm:$0xff]
    %v1004 = vld [vmem:[#allocation15 + $0x718] sm:$0xff]
    %v1005 = vld [vmem:[#allocation15 + $0x720] sm:$0xff]
    %v1006 = vld [vmem:[#allocation15 + $0x728] sm:$0xff]
    %v1007 = vld [vmem:[#allocation15 + $0x730] sm:$0xff]
    %v1008 = vld [vmem:[#allocation15 + $0x738] sm:$0xff]
    %v1009 = vld [vmem:[#allocation15 + $0x740] sm:$0xff]
    %v1010 = vld [vmem:[#allocation15 + $0x748] sm:$0xff]
    %v1011 = vld [vmem:[#allocation15 + $0x750] sm:$0xff]
    %v1012 = vld [vmem:[#allocation15 + $0x758] sm:$0xff]
    %v1013 = vld [vmem:[#allocation15 + $0x760] sm:$0xff]
    %v1014 = vld [vmem:[#allocation15 + $0x768] sm:$0xff]
    %v1015 = vld [vmem:[#allocation15 + $0x770] sm:$0xff]
    %v1016 = vld [vmem:[#allocation15 + $0x778] sm:$0xff]
    %v1017 = vld [vmem:[#allocation15 + $0x780] sm:$0xff]
    %v1018 = vld [vmem:[#allocation15 + $0x788] sm:$0xff]
    %v1019 = vld [vmem:[#allocation15 + $0x790] sm:$0xff]
    %v1020 = vld [vmem:[#allocation15 + $0x798] sm:$0xff]
    %v1021 = vld [vmem:[#allocation15 + $0x7a0] sm:$0xff]
    %v1022 = vld [vmem:[#allocation15 + $0x7a8] sm:$0xff]
    %v1023 = vld [vmem:[#allocation15 + $0x7b0] sm:$0xff]
    %v1024 = vld [vmem:[#allocation15 + $0x7b8] sm:$0xff]
    %v1025 = vld [vmem:[#allocation15 + $0x7c0] sm:$0xff]
    %v1026 = vld [vmem:[#allocation15 + $0x7c8] sm:$0xff]
    %v1027 = vld [vmem:[#allocation15 + $0x7d0] sm:$0xff]
    %v1028 = vld [vmem:[#allocation15 + $0x7d8] sm:$0xff]
    %v1029 = vld [vmem:[#allocation15 + $0x7e0] sm:$0xff]
    %v1030 = vld [vmem:[#allocation15 + $0x7e8] sm:$0xff]
    %v1031 = vld [vmem:[#allocation15 + $0x7f0] sm:$0xff]
    %v1032 = vld [vmem:[#allocation15 + $0x7f8] sm:$0xff]
    %v1033 = vld [vmem:[#allocation15 + $0x800] sm:$0xff]
    %v1034 = vld [vmem:[#allocation15 + $0x808] sm:$0xff]
    %v1035 = vld [vmem:[#allocation15 + $0x810] sm:$0xff]
    %v1036 = vld [vmem:[#allocation15 + $0x818] sm:$0xff]
    %v1037 = vld [vmem:[#allocation15 + $0x820] sm:$0xff]
    %v1038 = vld [vmem:[#allocation15 + $0x828] sm:$0xff]
    %v1039 = vld [vmem:[#allocation15 + $0x830] sm:$0xff]
    %v1040 = vld [vmem:[#allocation15 + $0x838] sm:$0xff]
    %v1041 = vld [vmem:[#allocation15 + $0x840] sm:$0xff]
    %v1042 = vld [vmem:[#allocation15 + $0x848] sm:$0xff]
    %v1043 = vld [vmem:[#allocation15 + $0x850] sm:$0xff]
    %v1044 = vld [vmem:[#allocation15 + $0x858] sm:$0xff]
    %v1045 = vld [vmem:[#allocation15 + $0x860] sm:$0xff]
    %v1046 = vld [vmem:[#allocation15 + $0x868] sm:$0xff]
    %v1047 = vld [vmem:[#allocation15 + $0x870] sm:$0xff]
    %v1048 = vld [vmem:[#allocation15 + $0x878] sm:$0xff]
    %v1049 = vld [vmem:[#allocation15 + $0x880] sm:$0xff]
    %v1050 = vld [vmem:[#allocation15 + $0x888] sm:$0xff]
    %v1051 = vld [vmem:[#allocation15 + $0x890] sm:$0xff]
    %v1052 = vld [vmem:[#allocation15 + $0x898] sm:$0xff]
    %v1053 = vld [vmem:[#allocation15 + $0x8a0] sm:$0xff]
    %v1054 = vld [vmem:[#allocation15 + $0x8a8] sm:$0xff]
    %v1055 = vld [vmem:[#allocation15 + $0x8b0] sm:$0xff]
    %v1056 = vld [vmem:[#allocation15 + $0x8b8] sm:$0xff]
    %v1057 = vld [vmem:[#allocation15 + $0x8c0] sm:$0xff]
    %v1058 = vld [vmem:[#allocation15 + $0x8c8] sm:$0xff]
    %v1059 = vld [vmem:[#allocation15 + $0x8d0] sm:$0xff]
    %v1060 = vld [vmem:[#allocation15 + $0x8d8] sm:$0xff]
    %v1061 = vld [vmem:[#allocation15 + $0x8e0] sm:$0xff]
    %v1062 = vld [vmem:[#allocation15 + $0x8e8] sm:$0xff]
    %v1063 = vld [vmem:[#allocation15 + $0x8f0] sm:$0xff]
    %v1064 = vld [vmem:[#allocation15 + $0x8f8] sm:$0xff]
    %v1065 = vld [vmem:[#allocation15 + $0x900] sm:$0xff]
    %v1066 = vld [vmem:[#allocation15 + $0x908] sm:$0xff]
    %v1067 = vld [vmem:[#allocation15 + $0x910] sm:$0xff]
    %v1068 = vld [vmem:[#allocation15 + $0x918] sm:$0xff]
    %v1069 = vld [vmem:[#allocation15 + $0x920] sm:$0xff]
    %v1070 = vld [vmem:[#allocation15 + $0x928] sm:$0xff]
    %v1071 = vld [vmem:[#allocation15 + $0x930] sm:$0xff]
    %v1072 = vld [vmem:[#allocation15 + $0x938] sm:$0xff]
    %v1073 = vld [vmem:[#allocation15 + $0x940] sm:$0xff]
    %v1074 = vld [vmem:[#allocation15 + $0x948] sm:$0xff]
    %v1075 = vld [vmem:[#allocation15 + $0x950] sm:$0xff]
    %v1076 = vld [vmem:[#allocation15 + $0x958] sm:$0xff]
    %v1077 = vld [vmem:[#allocation15 + $0x960] sm:$0xff]
    %v1078 = vld [vmem:[#allocation15 + $0x968] sm:$0xff]
    %v1079 = vld [vmem:[#allocation15 + $0x970] sm:$0xff]
    %v1080 = vld [vmem:[#allocation15 + $0x978] sm:$0xff]
    %v1081 = vld [vmem:[#allocation15 + $0x980] sm:$0xff]
    %v1082 = vld [vmem:[#allocation15 + $0x988] sm:$0xff]
    %v1083 = vld [vmem:[#allocation15 + $0x990] sm:$0xff]
    %v1084 = vld [vmem:[#allocation15 + $0x998] sm:$0xff]
    %v1085 = vld [vmem:[#allocation15 + $0x9a0] sm:$0xff]
    %v1086 = vld [vmem:[#allocation15 + $0x9a8] sm:$0xff]
    %v1087 = vld [vmem:[#allocation15 + $0x9b0] sm:$0xff]
    %v1088 = vld [vmem:[#allocation15 + $0x9b8] sm:$0xff]
    %v1089 = vld [vmem:[#allocation15 + $0x9c0] sm:$0xff]
    %v1090 = vld [vmem:[#allocation15 + $0x9c8] sm:$0xff]
    %v1091 = vld [vmem:[#allocation15 + $0x9d0] sm:$0xff]
    %v1092 = vld [vmem:[#allocation15 + $0x9d8] sm:$0xff]
    %v1093 = vld [vmem:[#allocation15 + $0x9e0] sm:$0xff]
    %v1094 = vld [vmem:[#allocation15 + $0x9e8] sm:$0xff]
    %v1095 = vld [vmem:[#allocation15 + $0x9f0] sm:$0xff]
    %v1096 = vld [vmem:[#allocation15 + $0x9f8] sm:$0xff]
    %v1097 = vld [vmem:[#allocation17] sm:$0xff]
    %v1099 = vlaneseq
    %v1100 = vshrl.u32 %v1099, 7
    %v1101 = vsub.s32 0, %v1100
    %v1102 = vrot.slane %v1097, %v1101
    %v1103 = vlaneseq
    %v1104 = vshrl.u32 %v1103, 7
    %v1105 = vsub.s32 1, %v1104
    %v1106 = vrot.slane %v1097, %v1105
    %v1107 = vlaneseq
    %v1108 = vshrl.u32 %v1107, 7
    %v1109 = vsub.s32 2, %v1108
    %v1110 = vrot.slane %v1097, %v1109
    %v1111 = vlaneseq
    %v1112 = vshrl.u32 %v1111, 7
    %v1113 = vsub.s32 3, %v1112
    %v1114 = vrot.slane %v1097, %v1113
    %v1115 = vlaneseq
    %v1116 = vshrl.u32 %v1115, 7
    %v1117 = vsub.s32 4, %v1116
    %v1118 = vrot.slane %v1097, %v1117
    %v1119 = vlaneseq
    %v1120 = vshrl.u32 %v1119, 7
    %v1121 = vsub.s32 5, %v1120
    %v1122 = vrot.slane %v1097, %v1121
    %v1123 = vlaneseq
    %v1124 = vshrl.u32 %v1123, 7
    %v1125 = vsub.s32 6, %v1124
    %v1126 = vrot.slane %v1097, %v1125
    %v1127 = vlaneseq
    %v1128 = vshrl.u32 %v1127, 7
    %v1129 = vsub.s32 7, %v1128
    %v1130 = vrot.slane %v1097, %v1129
    %v1459 = vunpack.c.l.b16 %v777
    %v1460 = vunpack.c.h.b16 %v777
    %v1461 = vunpack.c.l.b16 %v778
    %v1462 = vunpack.c.h.b16 %v778
    %v1463 = vunpack.c.l.b16 %v779
    %v1464 = vunpack.c.h.b16 %v779
    %v1465 = vunpack.c.l.b16 %v780
    %v1466 = vunpack.c.h.b16 %v780
    %v1467 = vunpack.c.l.b16 %v781
    %v1468 = vunpack.c.h.b16 %v781
    %v1469 = vunpack.c.l.b16 %v782
    %v1470 = vunpack.c.h.b16 %v782
    %v1471 = vunpack.c.l.b16 %v783
    %v1472 = vunpack.c.h.b16 %v783
    %v1473 = vunpack.c.l.b16 %v784
    %v1474 = vunpack.c.h.b16 %v784
    %v1475 = vunpack.c.l.b16 %v785
    %v1476 = vunpack.c.h.b16 %v785
    %v1477 = vunpack.c.l.b16 %v786
    %v1478 = vunpack.c.h.b16 %v786
    %v1479 = vunpack.c.l.b16 %v787
    %v1480 = vunpack.c.h.b16 %v787
    %v1481 = vunpack.c.l.b16 %v788
    %v1482 = vunpack.c.h.b16 %v788
    %v1483 = vunpack.c.l.b16 %v789
    %v1484 = vunpack.c.h.b16 %v789
    %v1485 = vunpack.c.l.b16 %v790
    %v1486 = vunpack.c.h.b16 %v790
    %v1487 = vunpack.c.l.b16 %v791
    %v1488 = vunpack.c.h.b16 %v791
    %v1489 = vunpack.c.l.b16 %v792
    %v1490 = vunpack.c.h.b16 %v792
    %v1491 = vunpack.c.l.b16 %v793
    %v1492 = vunpack.c.h.b16 %v793
    %v1493 = vunpack.c.l.b16 %v794
    %v1494 = vunpack.c.h.b16 %v794
    %v1495 = vunpack.c.l.b16 %v795
    %v1496 = vunpack.c.h.b16 %v795
    %v1497 = vunpack.c.l.b16 %v796
    %v1498 = vunpack.c.h.b16 %v796
    %v1499 = vunpack.c.l.b16 %v797
    %v1500 = vunpack.c.h.b16 %v797
    %v1501 = vunpack.c.l.b16 %v798
    %v1502 = vunpack.c.h.b16 %v798
    %v1503 = vunpack.c.l.b16 %v799
    %v1504 = vunpack.c.h.b16 %v799
    %v1505 = vunpack.c.l.b16 %v800
    %v1506 = vunpack.c.h.b16 %v800
    %v1507 = vunpack.c.l.b16 %v801
    %v1508 = vunpack.c.h.b16 %v801
    %v1509 = vunpack.c.l.b16 %v802
    %v1510 = vunpack.c.h.b16 %v802
    %v1511 = vunpack.c.l.b16 %v803
    %v1512 = vunpack.c.h.b16 %v803
    %v1513 = vunpack.c.l.b16 %v804
    %v1514 = vunpack.c.h.b16 %v804
    %v1515 = vunpack.c.l.b16 %v805
    %v1516 = vunpack.c.h.b16 %v805
    %v1517 = vunpack.c.l.b16 %v806
    %v1518 = vunpack.c.h.b16 %v806
    %v1519 = vunpack.c.l.b16 %v807
    %v1520 = vunpack.c.h.b16 %v807
    %v1521 = vunpack.c.l.b16 %v808
    %v1522 = vunpack.c.h.b16 %v808
    %v1523 = vunpack.c.l.b16 %v809
    %v1524 = vunpack.c.h.b16 %v809
    %v1525 = vunpack.c.l.b16 %v810
    %v1526 = vunpack.c.h.b16 %v810
    %v1527 = vunpack.c.l.b16 %v811
    %v1528 = vunpack.c.h.b16 %v811
    %v1529 = vunpack.c.l.b16 %v812
    %v1530 = vunpack.c.h.b16 %v812
    %v1531 = vunpack.c.l.b16 %v813
    %v1532 = vunpack.c.h.b16 %v813
    %v1533 = vunpack.c.l.b16 %v814
    %v1534 = vunpack.c.h.b16 %v814
    %v1535 = vunpack.c.l.b16 %v815
    %v1536 = vunpack.c.h.b16 %v815
    %v1537 = vunpack.c.l.b16 %v816
    %v1538 = vunpack.c.h.b16 %v816
    %v1539 = vunpack.c.l.b16 %v817
    %v1540 = vunpack.c.h.b16 %v817
    %v1541 = vunpack.c.l.b16 %v818
    %v1542 = vunpack.c.h.b16 %v818
    %v1543 = vunpack.c.l.b16 %v819
    %v1544 = vunpack.c.h.b16 %v819
    %v1545 = vunpack.c.l.b16 %v820
    %v1546 = vunpack.c.h.b16 %v820
    %v1547 = vunpack.c.l.b16 %v821
    %v1548 = vunpack.c.h.b16 %v821
    %v1549 = vunpack.c.l.b16 %v822
    %v1550 = vunpack.c.h.b16 %v822
    %v1551 = vunpack.c.l.b16 %v823
    %v1552 = vunpack.c.h.b16 %v823
    %v1553 = vunpack.c.l.b16 %v824
    %v1554 = vunpack.c.h.b16 %v824
    %v1555 = vunpack.c.l.b16 %v825
    %v1556 = vunpack.c.h.b16 %v825
    %v1557 = vunpack.c.l.b16 %v826
    %v1558 = vunpack.c.h.b16 %v826
    %v1559 = vunpack.c.l.b16 %v827
    %v1560 = vunpack.c.h.b16 %v827
    %v1561 = vunpack.c.l.b16 %v828
    %v1562 = vunpack.c.h.b16 %v828
    %v1563 = vunpack.c.l.b16 %v829
    %v1564 = vunpack.c.h.b16 %v829
    %v1565 = vunpack.c.l.b16 %v830
    %v1566 = vunpack.c.h.b16 %v830
    %v1567 = vunpack.c.l.b16 %v831
    %v1568 = vunpack.c.h.b16 %v831
    %v1569 = vunpack.c.l.b16 %v832
    %v1570 = vunpack.c.h.b16 %v832
    %v1571 = vunpack.c.l.b16 %v833
    %v1572 = vunpack.c.h.b16 %v833
    %v1573 = vunpack.c.l.b16 %v834
    %v1574 = vunpack.c.h.b16 %v834
    %v1575 = vunpack.c.l.b16 %v835
    %v1576 = vunpack.c.h.b16 %v835
    %v1577 = vunpack.c.l.b16 %v836
    %v1578 = vunpack.c.h.b16 %v836
    %v1579 = vunpack.c.l.b16 %v837
    %v1580 = vunpack.c.h.b16 %v837
    %v1581 = vunpack.c.l.b16 %v838
    %v1582 = vunpack.c.h.b16 %v838
    %v1583 = vunpack.c.l.b16 %v839
    %v1584 = vunpack.c.h.b16 %v839
    %v1585 = vunpack.c.l.b16 %v840
    %v1586 = vunpack.c.h.b16 %v840
    %v1587 = vunpack.c.l.b16 %v841
    %v1588 = vunpack.c.h.b16 %v841
    %v1589 = vunpack.c.l.b16 %v842
    %v1590 = vunpack.c.h.b16 %v842
    %v1591 = vunpack.c.l.b16 %v843
    %v1592 = vunpack.c.h.b16 %v843
    %v1593 = vunpack.c.l.b16 %v844
    %v1594 = vunpack.c.h.b16 %v844
    %v1595 = vunpack.c.l.b16 %v845
    %v1596 = vunpack.c.h.b16 %v845
    %v1597 = vunpack.c.l.b16 %v846
    %v1598 = vunpack.c.h.b16 %v846
    %v1599 = vunpack.c.l.b16 %v847
    %v1600 = vunpack.c.h.b16 %v847
    %v1601 = vunpack.c.l.b16 %v848
    %v1602 = vunpack.c.h.b16 %v848
    %v1603 = vunpack.c.l.b16 %v849
    %v1604 = vunpack.c.h.b16 %v849
    %v1605 = vunpack.c.l.b16 %v850
    %v1606 = vunpack.c.h.b16 %v850
    %v1607 = vunpack.c.l.b16 %v851
    %v1608 = vunpack.c.h.b16 %v851
    %v1609 = vunpack.c.l.b16 %v852
    %v1610 = vunpack.c.h.b16 %v852
    %v1611 = vunpack.c.l.b16 %v853
    %v1612 = vunpack.c.h.b16 %v853
    %v1613 = vunpack.c.l.b16 %v854
    %v1614 = vunpack.c.h.b16 %v854
    %v1615 = vunpack.c.l.b16 %v855
    %v1616 = vunpack.c.h.b16 %v855
    %v1617 = vunpack.c.l.b16 %v856
    %v1618 = vunpack.c.h.b16 %v856
    %v1619 = vunpack.c.l.b16 %v857
    %v1620 = vunpack.c.h.b16 %v857
    %v1621 = vunpack.c.l.b16 %v858
    %v1622 = vunpack.c.h.b16 %v858
    %v1623 = vunpack.c.l.b16 %v859
    %v1624 = vunpack.c.h.b16 %v859
    %v1625 = vunpack.c.l.b16 %v860
    %v1626 = vunpack.c.h.b16 %v860
    %v1627 = vunpack.c.l.b16 %v861
    %v1628 = vunpack.c.h.b16 %v861
    %v1629 = vunpack.c.l.b16 %v862
    %v1630 = vunpack.c.h.b16 %v862
    %v1631 = vunpack.c.l.b16 %v863
    %v1632 = vunpack.c.h.b16 %v863
    %v1633 = vunpack.c.l.b16 %v864
    %v1634 = vunpack.c.h.b16 %v864
    %v1635 = vunpack.c.l.b16 %v865
    %v1636 = vunpack.c.h.b16 %v865
    %v1637 = vunpack.c.l.b16 %v866
    %v1638 = vunpack.c.h.b16 %v866
    %v1639 = vunpack.c.l.b16 %v867
    %v1640 = vunpack.c.h.b16 %v867
    %v1641 = vunpack.c.l.b16 %v868
    %v1642 = vunpack.c.h.b16 %v868
    %v1643 = vunpack.c.l.b16 %v869
    %v1644 = vunpack.c.h.b16 %v869
    %v1645 = vunpack.c.l.b16 %v870
    %v1646 = vunpack.c.h.b16 %v870
    %v1647 = vunpack.c.l.b16 %v871
    %v1648 = vunpack.c.h.b16 %v871
    %v1649 = vunpack.c.l.b16 %v872
    %v1650 = vunpack.c.h.b16 %v872
    %v1651 = vunpack.c.l.b16 %v873
    %v1652 = vunpack.c.h.b16 %v873
    %v1653 = vunpack.c.l.b16 %v874
    %v1654 = vunpack.c.h.b16 %v874
    %v1655 = vunpack.c.l.b16 %v875
    %v1656 = vunpack.c.h.b16 %v875
    %v1657 = vunpack.c.l.b16 %v876
    %v1658 = vunpack.c.h.b16 %v876
    %v1659 = vunpack.c.l.b16 %v877
    %v1660 = vunpack.c.h.b16 %v877
    %v1661 = vunpack.c.l.b16 %v878
    %v1662 = vunpack.c.h.b16 %v878
    %v1663 = vunpack.c.l.b16 %v879
    %v1664 = vunpack.c.h.b16 %v879
    %v1665 = vunpack.c.l.b16 %v880
    %v1666 = vunpack.c.h.b16 %v880
    %v1667 = vunpack.c.l.b16 %v881
    %v1668 = vunpack.c.h.b16 %v881
    %v1669 = vunpack.c.l.b16 %v882
    %v1670 = vunpack.c.h.b16 %v882
    %v1671 = vunpack.c.l.b16 %v883
    %v1672 = vunpack.c.h.b16 %v883
    %v1673 = vunpack.c.l.b16 %v884
    %v1674 = vunpack.c.h.b16 %v884
    %v1675 = vunpack.c.l.b16 %v885
    %v1676 = vunpack.c.h.b16 %v885
    %v1677 = vunpack.c.l.b16 %v886
    %v1678 = vunpack.c.h.b16 %v886
    %v1679 = vunpack.c.l.b16 %v887
    %v1680 = vunpack.c.h.b16 %v887
    %v1681 = vunpack.c.l.b16 %v888
    %v1682 = vunpack.c.h.b16 %v888
    %v1683 = vunpack.c.l.b16 %v889
    %v1684 = vunpack.c.h.b16 %v889
    %v1685 = vunpack.c.l.b16 %v890
    %v1686 = vunpack.c.h.b16 %v890
    %v1687 = vunpack.c.l.b16 %v891
    %v1688 = vunpack.c.h.b16 %v891
    %v1689 = vunpack.c.l.b16 %v892
    %v1690 = vunpack.c.h.b16 %v892
    %v1691 = vunpack.c.l.b16 %v893
    %v1692 = vunpack.c.h.b16 %v893
    %v1693 = vunpack.c.l.b16 %v894
    %v1694 = vunpack.c.h.b16 %v894
    %v1695 = vunpack.c.l.b16 %v895
    %v1696 = vunpack.c.h.b16 %v895
    %v1697 = vunpack.c.l.b16 %v896
    %v1698 = vunpack.c.h.b16 %v896
    %v1699 = vunpack.c.l.b16 %v897
    %v1700 = vunpack.c.h.b16 %v897
    %v1701 = vunpack.c.l.b16 %v898
    %v1702 = vunpack.c.h.b16 %v898
    %v1703 = vunpack.c.l.b16 %v899
    %v1704 = vunpack.c.h.b16 %v899
    %v1705 = vunpack.c.l.b16 %v900
    %v1706 = vunpack.c.h.b16 %v900
    %v1707 = vunpack.c.l.b16 %v901
    %v1708 = vunpack.c.h.b16 %v901
    %v1709 = vunpack.c.l.b16 %v902
    %v1710 = vunpack.c.h.b16 %v902
    %v1711 = vunpack.c.l.b16 %v903
    %v1712 = vunpack.c.h.b16 %v903
    %v1713 = vunpack.c.l.b16 %v904
    %v1714 = vunpack.c.h.b16 %v904
    %v1715 = vunpack.c.l.b16 %v905
    %v1716 = vunpack.c.h.b16 %v905
    %v1717 = vunpack.c.l.b16 %v906
    %v1718 = vunpack.c.h.b16 %v906
    %v1719 = vunpack.c.l.b16 %v907
    %v1720 = vunpack.c.h.b16 %v907
    %v1721 = vunpack.c.l.b16 %v908
    %v1722 = vunpack.c.h.b16 %v908
    %v1723 = vunpack.c.l.b16 %v909
    %v1724 = vunpack.c.h.b16 %v909
    %v1725 = vunpack.c.l.b16 %v910
    %v1726 = vunpack.c.h.b16 %v910
    %v1727 = vunpack.c.l.b16 %v911
    %v1728 = vunpack.c.h.b16 %v911
    %v1729 = vunpack.c.l.b16 %v912
    %v1730 = vunpack.c.h.b16 %v912
    %v1731 = vunpack.c.l.b16 %v913
    %v1732 = vunpack.c.h.b16 %v913
    %v1733 = vunpack.c.l.b16 %v914
    %v1734 = vunpack.c.h.b16 %v914
    %v1735 = vunpack.c.l.b16 %v915
    %v1736 = vunpack.c.h.b16 %v915
    %v1737 = vunpack.c.l.b16 %v916
    %v1738 = vunpack.c.h.b16 %v916
    %v1739 = vunpack.c.l.b16 %v917
    %v1740 = vunpack.c.h.b16 %v917
    %v1741 = vunpack.c.l.b16 %v918
    %v1742 = vunpack.c.h.b16 %v918
    %v1743 = vunpack.c.l.b16 %v919
    %v1744 = vunpack.c.h.b16 %v919
    %v1745 = vunpack.c.l.b16 %v920
    %v1746 = vunpack.c.h.b16 %v920
    %v1747 = vunpack.c.l.b16 %v921
    %v1748 = vunpack.c.h.b16 %v921
    %v1749 = vunpack.c.l.b16 %v922
    %v1750 = vunpack.c.h.b16 %v922
    %v1751 = vunpack.c.l.b16 %v923
    %v1752 = vunpack.c.h.b16 %v923
    %v1753 = vunpack.c.l.b16 %v924
    %v1754 = vunpack.c.h.b16 %v924
    %v1755 = vunpack.c.l.b16 %v925
    %v1756 = vunpack.c.h.b16 %v925
    %v1757 = vunpack.c.l.b16 %v926
    %v1758 = vunpack.c.h.b16 %v926
    %v1759 = vunpack.c.l.b16 %v927
    %v1760 = vunpack.c.h.b16 %v927
    %v1761 = vunpack.c.l.b16 %v928
    %v1762 = vunpack.c.h.b16 %v928
    %v1763 = vunpack.c.l.b16 %v929
    %v1764 = vunpack.c.h.b16 %v929
    %v1765 = vunpack.c.l.b16 %v930
    %v1766 = vunpack.c.h.b16 %v930
    %v1767 = vunpack.c.l.b16 %v931
    %v1768 = vunpack.c.h.b16 %v931
    %v1769 = vunpack.c.l.b16 %v932
    %v1770 = vunpack.c.h.b16 %v932
    %v1771 = vunpack.c.l.b16 %v933
    %v1772 = vunpack.c.h.b16 %v933
    %v1773 = vunpack.c.l.b16 %v934
    %v1774 = vunpack.c.h.b16 %v934
    %v1775 = vunpack.c.l.b16 %v935
    %v1776 = vunpack.c.h.b16 %v935
    %v1777 = vunpack.c.l.b16 %v936
    %v1778 = vunpack.c.h.b16 %v936
    %v1779 = vunpack.c.l.b16 %v937
    %v1780 = vunpack.c.h.b16 %v937
    %v1781 = vunpack.c.l.b16 %v938
    %v1782 = vunpack.c.h.b16 %v938
    %v1783 = vunpack.c.l.b16 %v939
    %v1784 = vunpack.c.h.b16 %v939
    %v1785 = vunpack.c.l.b16 %v940
    %v1786 = vunpack.c.h.b16 %v940
    %v1787 = vunpack.c.l.b16 %v941
    %v1788 = vunpack.c.h.b16 %v941
    %v1789 = vunpack.c.l.b16 %v942
    %v1790 = vunpack.c.h.b16 %v942
    %v1791 = vunpack.c.l.b16 %v943
    %v1792 = vunpack.c.h.b16 %v943
    %v1793 = vunpack.c.l.b16 %v944
    %v1794 = vunpack.c.h.b16 %v944
    %v1795 = vunpack.c.l.b16 %v945
    %v1796 = vunpack.c.h.b16 %v945
    %v1797 = vunpack.c.l.b16 %v946
    %v1798 = vunpack.c.h.b16 %v946
    %v1799 = vunpack.c.l.b16 %v947
    %v1800 = vunpack.c.h.b16 %v947
    %v1801 = vunpack.c.l.b16 %v948
    %v1802 = vunpack.c.h.b16 %v948
    %v1803 = vunpack.c.l.b16 %v949
    %v1804 = vunpack.c.h.b16 %v949
    %v1805 = vunpack.c.l.b16 %v950
    %v1806 = vunpack.c.h.b16 %v950
    %v1807 = vunpack.c.l.b16 %v951
    %v1808 = vunpack.c.h.b16 %v951
    %v1809 = vunpack.c.l.b16 %v952
    %v1810 = vunpack.c.h.b16 %v952
    %v1811 = vunpack.c.l.b16 %v953
    %v1812 = vunpack.c.h.b16 %v953
    %v1813 = vunpack.c.l.b16 %v954
    %v1814 = vunpack.c.h.b16 %v954
    %v1815 = vunpack.c.l.b16 %v955
    %v1816 = vunpack.c.h.b16 %v955
    %v1817 = vunpack.c.l.b16 %v956
    %v1818 = vunpack.c.h.b16 %v956
    %v1819 = vunpack.c.l.b16 %v957
    %v1820 = vunpack.c.h.b16 %v957
    %v1821 = vunpack.c.l.b16 %v958
    %v1822 = vunpack.c.h.b16 %v958
    %v1823 = vunpack.c.l.b16 %v959
    %v1824 = vunpack.c.h.b16 %v959
    %v1825 = vunpack.c.l.b16 %v960
    %v1826 = vunpack.c.h.b16 %v960
    %v1827 = vunpack.c.l.b16 %v961
    %v1828 = vunpack.c.h.b16 %v961
    %v1829 = vunpack.c.l.b16 %v962
    %v1830 = vunpack.c.h.b16 %v962
    %v1831 = vunpack.c.l.b16 %v963
    %v1832 = vunpack.c.h.b16 %v963
    %v1833 = vunpack.c.l.b16 %v964
    %v1834 = vunpack.c.h.b16 %v964
    %v1835 = vunpack.c.l.b16 %v965
    %v1836 = vunpack.c.h.b16 %v965
    %v1837 = vunpack.c.l.b16 %v966
    %v1838 = vunpack.c.h.b16 %v966
    %v1839 = vunpack.c.l.b16 %v967
    %v1840 = vunpack.c.h.b16 %v967
    %v1841 = vunpack.c.l.b16 %v968
    %v1842 = vunpack.c.h.b16 %v968
    %v1843 = vunpack.c.l.b16 %v969
    %v1844 = vunpack.c.h.b16 %v969
    %v1845 = vunpack.c.l.b16 %v970
    %v1846 = vunpack.c.h.b16 %v970
    %v1847 = vunpack.c.l.b16 %v971
    %v1848 = vunpack.c.h.b16 %v971
    %v1849 = vunpack.c.l.b16 %v972
    %v1850 = vunpack.c.h.b16 %v972
    %v1851 = vunpack.c.l.b16 %v973
    %v1852 = vunpack.c.h.b16 %v973
    %v1853 = vunpack.c.l.b16 %v974
    %v1854 = vunpack.c.h.b16 %v974
    %v1855 = vunpack.c.l.b16 %v975
    %v1856 = vunpack.c.h.b16 %v975
    %v1857 = vunpack.c.l.b16 %v976
    %v1858 = vunpack.c.h.b16 %v976
    %v1859 = vunpack.c.l.b16 %v977
    %v1860 = vunpack.c.h.b16 %v977
    %v1861 = vunpack.c.l.b16 %v978
    %v1862 = vunpack.c.h.b16 %v978
    %v1863 = vunpack.c.l.b16 %v979
    %v1864 = vunpack.c.h.b16 %v979
    %v1865 = vunpack.c.l.b16 %v980
    %v1866 = vunpack.c.h.b16 %v980
    %v1867 = vunpack.c.l.b16 %v981
    %v1868 = vunpack.c.h.b16 %v981
    %v1869 = vunpack.c.l.b16 %v982
    %v1870 = vunpack.c.h.b16 %v982
    %v1871 = vunpack.c.l.b16 %v983
    %v1872 = vunpack.c.h.b16 %v983
    %v1873 = vunpack.c.l.b16 %v984
    %v1874 = vunpack.c.h.b16 %v984
    %v1875 = vunpack.c.l.b16 %v985
    %v1876 = vunpack.c.h.b16 %v985
    %v1877 = vunpack.c.l.b16 %v986
    %v1878 = vunpack.c.h.b16 %v986
    %v1879 = vunpack.c.l.b16 %v987
    %v1880 = vunpack.c.h.b16 %v987
    %v1881 = vunpack.c.l.b16 %v988
    %v1882 = vunpack.c.h.b16 %v988
    %v1883 = vunpack.c.l.b16 %v989
    %v1884 = vunpack.c.h.b16 %v989
    %v1885 = vunpack.c.l.b16 %v990
    %v1886 = vunpack.c.h.b16 %v990
    %v1887 = vunpack.c.l.b16 %v991
    %v1888 = vunpack.c.h.b16 %v991
    %v1889 = vunpack.c.l.b16 %v992
    %v1890 = vunpack.c.h.b16 %v992
    %v1891 = vunpack.c.l.b16 %v993
    %v1892 = vunpack.c.h.b16 %v993
    %v1893 = vunpack.c.l.b16 %v994
    %v1894 = vunpack.c.h.b16 %v994
    %v1895 = vunpack.c.l.b16 %v995
    %v1896 = vunpack.c.h.b16 %v995
    %v1897 = vunpack.c.l.b16 %v996
    %v1898 = vunpack.c.h.b16 %v996
    %v1899 = vunpack.c.l.b16 %v997
    %v1900 = vunpack.c.h.b16 %v997
    %v1901 = vunpack.c.l.b16 %v998
    %v1902 = vunpack.c.h.b16 %v998
    %v1903 = vunpack.c.l.b16 %v999
    %v1904 = vunpack.c.h.b16 %v999
    %v1905 = vunpack.c.l.b16 %v1000
    %v1906 = vunpack.c.h.b16 %v1000
    %v1907 = vunpack.c.l.b16 %v1001
    %v1908 = vunpack.c.h.b16 %v1001
    %v1909 = vunpack.c.l.b16 %v1002
    %v1910 = vunpack.c.h.b16 %v1002
    %v1911 = vunpack.c.l.b16 %v1003
    %v1912 = vunpack.c.h.b16 %v1003
    %v1913 = vunpack.c.l.b16 %v1004
    %v1914 = vunpack.c.h.b16 %v1004
    %v1915 = vunpack.c.l.b16 %v1005
    %v1916 = vunpack.c.h.b16 %v1005
    %v1917 = vunpack.c.l.b16 %v1006
    %v1918 = vunpack.c.h.b16 %v1006
    %v1919 = vunpack.c.l.b16 %v1007
    %v1920 = vunpack.c.h.b16 %v1007
    %v1921 = vunpack.c.l.b16 %v1008
    %v1922 = vunpack.c.h.b16 %v1008
    %v1923 = vunpack.c.l.b16 %v1009
    %v1924 = vunpack.c.h.b16 %v1009
    %v1925 = vunpack.c.l.b16 %v1010
    %v1926 = vunpack.c.h.b16 %v1010
    %v1927 = vunpack.c.l.b16 %v1011
    %v1928 = vunpack.c.h.b16 %v1011
    %v1929 = vunpack.c.l.b16 %v1012
    %v1930 = vunpack.c.h.b16 %v1012
    %v1931 = vunpack.c.l.b16 %v1013
    %v1932 = vunpack.c.h.b16 %v1013
    %v1933 = vunpack.c.l.b16 %v1014
    %v1934 = vunpack.c.h.b16 %v1014
    %v1935 = vunpack.c.l.b16 %v1015
    %v1936 = vunpack.c.h.b16 %v1015
    %v1937 = vunpack.c.l.b16 %v1016
    %v1938 = vunpack.c.h.b16 %v1016
    %v1939 = vunpack.c.l.b16 %v1017
    %v1940 = vunpack.c.h.b16 %v1017
    %v1941 = vunpack.c.l.b16 %v1018
    %v1942 = vunpack.c.h.b16 %v1018
    %v1943 = vunpack.c.l.b16 %v1019
    %v1944 = vunpack.c.h.b16 %v1019
    %v1945 = vunpack.c.l.b16 %v1020
    %v1946 = vunpack.c.h.b16 %v1020
    %v1947 = vunpack.c.l.b16 %v1021
    %v1948 = vunpack.c.h.b16 %v1021
    %v1949 = vunpack.c.l.b16 %v1022
    %v1950 = vunpack.c.h.b16 %v1022
    %v1951 = vunpack.c.l.b16 %v1023
    %v1952 = vunpack.c.h.b16 %v1023
    %v1953 = vunpack.c.l.b16 %v1024
    %v1954 = vunpack.c.h.b16 %v1024
    %v1955 = vunpack.c.l.b16 %v1025
    %v1956 = vunpack.c.h.b16 %v1025
    %v1957 = vunpack.c.l.b16 %v1026
    %v1958 = vunpack.c.h.b16 %v1026
    %v1959 = vunpack.c.l.b16 %v1027
    %v1960 = vunpack.c.h.b16 %v1027
    %v1961 = vunpack.c.l.b16 %v1028
    %v1962 = vunpack.c.h.b16 %v1028
    %v1963 = vunpack.c.l.b16 %v1029
    %v1964 = vunpack.c.h.b16 %v1029
    %v1965 = vunpack.c.l.b16 %v1030
    %v1966 = vunpack.c.h.b16 %v1030
    %v1967 = vunpack.c.l.b16 %v1031
    %v1968 = vunpack.c.h.b16 %v1031
    %v1969 = vunpack.c.l.b16 %v1032
    %v1970 = vunpack.c.h.b16 %v1032
    %v1971 = vunpack.c.l.b16 %v1033
    %v1972 = vunpack.c.h.b16 %v1033
    %v1973 = vunpack.c.l.b16 %v1034
    %v1974 = vunpack.c.h.b16 %v1034
    %v1975 = vunpack.c.l.b16 %v1035
    %v1976 = vunpack.c.h.b16 %v1035
    %v1977 = vunpack.c.l.b16 %v1036
    %v1978 = vunpack.c.h.b16 %v1036
    %v1979 = vunpack.c.l.b16 %v1037
    %v1980 = vunpack.c.h.b16 %v1037
    %v1981 = vunpack.c.l.b16 %v1038
    %v1982 = vunpack.c.h.b16 %v1038
    %v1983 = vunpack.c.l.b16 %v1039
    %v1984 = vunpack.c.h.b16 %v1039
    %v1985 = vunpack.c.l.b16 %v1040
    %v1986 = vunpack.c.h.b16 %v1040
    %v1987 = vunpack.c.l.b16 %v1041
    %v1988 = vunpack.c.h.b16 %v1041
    %v1989 = vunpack.c.l.b16 %v1042
    %v1990 = vunpack.c.h.b16 %v1042
    %v1991 = vunpack.c.l.b16 %v1043
    %v1992 = vunpack.c.h.b16 %v1043
    %v1993 = vunpack.c.l.b16 %v1044
    %v1994 = vunpack.c.h.b16 %v1044
    %v1995 = vunpack.c.l.b16 %v1045
    %v1996 = vunpack.c.h.b16 %v1045
    %v1997 = vunpack.c.l.b16 %v1046
    %v1998 = vunpack.c.h.b16 %v1046
    %v1999 = vunpack.c.l.b16 %v1047
    %v2000 = vunpack.c.h.b16 %v1047
    %v2001 = vunpack.c.l.b16 %v1048
    %v2002 = vunpack.c.h.b16 %v1048
    %v2003 = vunpack.c.l.b16 %v1049
    %v2004 = vunpack.c.h.b16 %v1049
    %v2005 = vunpack.c.l.b16 %v1050
    %v2006 = vunpack.c.h.b16 %v1050
    %v2007 = vunpack.c.l.b16 %v1051
    %v2008 = vunpack.c.h.b16 %v1051
    %v2009 = vunpack.c.l.b16 %v1052
    %v2010 = vunpack.c.h.b16 %v1052
    %v2011 = vunpack.c.l.b16 %v1053
    %v2012 = vunpack.c.h.b16 %v1053
    %v2013 = vunpack.c.l.b16 %v1054
    %v2014 = vunpack.c.h.b16 %v1054
    %v2015 = vunpack.c.l.b16 %v1055
    %v2016 = vunpack.c.h.b16 %v1055
    %v2017 = vunpack.c.l.b16 %v1056
    %v2018 = vunpack.c.h.b16 %v1056
    %v2019 = vunpack.c.l.b16 %v1057
    %v2020 = vunpack.c.h.b16 %v1057
    %v2021 = vunpack.c.l.b16 %v1058
    %v2022 = vunpack.c.h.b16 %v1058
    %v2023 = vunpack.c.l.b16 %v1059
    %v2024 = vunpack.c.h.b16 %v1059
    %v2025 = vunpack.c.l.b16 %v1060
    %v2026 = vunpack.c.h.b16 %v1060
    %v2027 = vunpack.c.l.b16 %v1061
    %v2028 = vunpack.c.h.b16 %v1061
    %v2029 = vunpack.c.l.b16 %v1062
    %v2030 = vunpack.c.h.b16 %v1062
    %v2031 = vunpack.c.l.b16 %v1063
    %v2032 = vunpack.c.h.b16 %v1063
    %v2033 = vunpack.c.l.b16 %v1064
    %v2034 = vunpack.c.h.b16 %v1064
    %v2035 = vunpack.c.l.b16 %v1065
    %v2036 = vunpack.c.h.b16 %v1065
    %v2037 = vunpack.c.l.b16 %v1066
    %v2038 = vunpack.c.h.b16 %v1066
    %v2039 = vunpack.c.l.b16 %v1067
    %v2040 = vunpack.c.h.b16 %v1067
    %v2041 = vunpack.c.l.b16 %v1068
    %v2042 = vunpack.c.h.b16 %v1068
    %v2043 = vunpack.c.l.b16 %v1069
    %v2044 = vunpack.c.h.b16 %v1069
    %v2045 = vunpack.c.l.b16 %v1070
    %v2046 = vunpack.c.h.b16 %v1070
    %v2047 = vunpack.c.l.b16 %v1071
    %v2048 = vunpack.c.h.b16 %v1071
    %v2049 = vunpack.c.l.b16 %v1072
    %v2050 = vunpack.c.h.b16 %v1072
    %v2051 = vunpack.c.l.b16 %v1073
    %v2052 = vunpack.c.h.b16 %v1073
    %v2053 = vunpack.c.l.b16 %v1074
    %v2054 = vunpack.c.h.b16 %v1074
    %v2055 = vunpack.c.l.b16 %v1075
    %v2056 = vunpack.c.h.b16 %v1075
    %v2057 = vunpack.c.l.b16 %v1076
    %v2058 = vunpack.c.h.b16 %v1076
    %v2059 = vunpack.c.l.b16 %v1077
    %v2060 = vunpack.c.h.b16 %v1077
    %v2061 = vunpack.c.l.b16 %v1078
    %v2062 = vunpack.c.h.b16 %v1078
    %v2063 = vunpack.c.l.b16 %v1079
    %v2064 = vunpack.c.h.b16 %v1079
    %v2065 = vunpack.c.l.b16 %v1080
    %v2066 = vunpack.c.h.b16 %v1080
    %v2067 = vunpack.c.l.b16 %v1081
    %v2068 = vunpack.c.h.b16 %v1081
    %v2069 = vunpack.c.l.b16 %v1082
    %v2070 = vunpack.c.h.b16 %v1082
    %v2071 = vunpack.c.l.b16 %v1083
    %v2072 = vunpack.c.h.b16 %v1083
    %v2073 = vunpack.c.l.b16 %v1084
    %v2074 = vunpack.c.h.b16 %v1084
    %v2075 = vunpack.c.l.b16 %v1085
    %v2076 = vunpack.c.h.b16 %v1085
    %v2077 = vunpack.c.l.b16 %v1086
    %v2078 = vunpack.c.h.b16 %v1086
    %v2079 = vunpack.c.l.b16 %v1087
    %v2080 = vunpack.c.h.b16 %v1087
    %v2081 = vunpack.c.l.b16 %v1088
    %v2082 = vunpack.c.h.b16 %v1088
    %v2083 = vunpack.c.l.b16 %v1089
    %v2084 = vunpack.c.h.b16 %v1089
    %v2085 = vunpack.c.l.b16 %v1090
    %v2086 = vunpack.c.h.b16 %v1090
    %v2087 = vunpack.c.l.b16 %v1091
    %v2088 = vunpack.c.h.b16 %v1091
    %v2089 = vunpack.c.l.b16 %v1092
    %v2090 = vunpack.c.h.b16 %v1092
    %v2091 = vunpack.c.l.b16 %v1093
    %v2092 = vunpack.c.h.b16 %v1093
    %v2093 = vunpack.c.l.b16 %v1094
    %v2094 = vunpack.c.h.b16 %v1094
    %v2095 = vunpack.c.l.b16 %v1095
    %v2096 = vunpack.c.h.b16 %v1095
    %v2097 = vunpack.c.l.b16 %v1096
    %v2098 = vunpack.c.h.b16 %v1096
    %v2099 = vpack.c.b16 %v1467, %v1459
    %v2100 = vpack.c.b16 %v1468, %v1460
    %v2101 = vpack.c.b16 %v1469, %v1461
    %v2102 = vpack.c.b16 %v1470, %v1462
    %v2103 = vpack.c.b16 %v1471, %v1463
    %v2104 = vpack.c.b16 %v1472, %v1464
    %v2105 = vpack.c.b16 %v1473, %v1465
    %v2106 = vpack.c.b16 %v1474, %v1466
    %v2107 = vpack.c.b16 %v1483, %v1475
    %v2108 = vpack.c.b16 %v1484, %v1476
    %v2109 = vpack.c.b16 %v1485, %v1477
    %v2110 = vpack.c.b16 %v1486, %v1478
    %v2111 = vpack.c.b16 %v1487, %v1479
    %v2112 = vpack.c.b16 %v1488, %v1480
    %v2113 = vpack.c.b16 %v1489, %v1481
    %v2114 = vpack.c.b16 %v1490, %v1482
    %v2115 = vpack.c.b16 %v1499, %v1491
    %v2116 = vpack.c.b16 %v1500, %v1492
    %v2117 = vpack.c.b16 %v1501, %v1493
    %v2118 = vpack.c.b16 %v1502, %v1494
    %v2119 = vpack.c.b16 %v1503, %v1495
    %v2120 = vpack.c.b16 %v1504, %v1496
    %v2121 = vpack.c.b16 %v1505, %v1497
    %v2122 = vpack.c.b16 %v1506, %v1498
    %v2123 = vpack.c.b16 %v1515, %v1507
    %v2124 = vpack.c.b16 %v1516, %v1508
    %v2125 = vpack.c.b16 %v1517, %v1509
    %v2126 = vpack.c.b16 %v1518, %v1510
    %v2127 = vpack.c.b16 %v1519, %v1511
    %v2128 = vpack.c.b16 %v1520, %v1512
    %v2129 = vpack.c.b16 %v1521, %v1513
    %v2130 = vpack.c.b16 %v1522, %v1514
    %v2131 = vpack.c.b16 %v1531, %v1523
    %v2132 = vpack.c.b16 %v1532, %v1524
    %v2133 = vpack.c.b16 %v1533, %v1525
    %v2134 = vpack.c.b16 %v1534, %v1526
    %v2135 = vpack.c.b16 %v1535, %v1527
    %v2136 = vpack.c.b16 %v1536, %v1528
    %v2137 = vpack.c.b16 %v1537, %v1529
    %v2138 = vpack.c.b16 %v1538, %v1530
    %v2139 = vpack.c.b16 %v1547, %v1539
    %v2140 = vpack.c.b16 %v1548, %v1540
    %v2141 = vpack.c.b16 %v1549, %v1541
    %v2142 = vpack.c.b16 %v1550, %v1542
    %v2143 = vpack.c.b16 %v1551, %v1543
    %v2144 = vpack.c.b16 %v1552, %v1544
    %v2145 = vpack.c.b16 %v1553, %v1545
    %v2146 = vpack.c.b16 %v1554, %v1546
    %v2147 = vpack.c.b16 %v1563, %v1555
    %v2148 = vpack.c.b16 %v1564, %v1556
    %v2149 = vpack.c.b16 %v1565, %v1557
    %v2150 = vpack.c.b16 %v1566, %v1558
    %v2151 = vpack.c.b16 %v1567, %v1559
    %v2152 = vpack.c.b16 %v1568, %v1560
    %v2153 = vpack.c.b16 %v1569, %v1561
    %v2154 = vpack.c.b16 %v1570, %v1562
    %v2155 = vpack.c.b16 %v1579, %v1571
    %v2156 = vpack.c.b16 %v1580, %v1572
    %v2157 = vpack.c.b16 %v1581, %v1573
    %v2158 = vpack.c.b16 %v1582, %v1574
    %v2159 = vpack.c.b16 %v1583, %v1575
    %v2160 = vpack.c.b16 %v1584, %v1576
    %v2161 = vpack.c.b16 %v1585, %v1577
    %v2162 = vpack.c.b16 %v1586, %v1578
    %v2163 = vpack.c.b16 %v1595, %v1587
    %v2164 = vpack.c.b16 %v1596, %v1588
    %v2165 = vpack.c.b16 %v1597, %v1589
    %v2166 = vpack.c.b16 %v1598, %v1590
    %v2167 = vpack.c.b16 %v1599, %v1591
    %v2168 = vpack.c.b16 %v1600, %v1592
    %v2169 = vpack.c.b16 %v1601, %v1593
    %v2170 = vpack.c.b16 %v1602, %v1594
    %v2171 = vpack.c.b16 %v1611, %v1603
    %v2172 = vpack.c.b16 %v1612, %v1604
    %v2173 = vpack.c.b16 %v1613, %v1605
    %v2174 = vpack.c.b16 %v1614, %v1606
    %v2175 = vpack.c.b16 %v1615, %v1607
    %v2176 = vpack.c.b16 %v1616, %v1608
    %v2177 = vpack.c.b16 %v1617, %v1609
    %v2178 = vpack.c.b16 %v1618, %v1610
    %v2179 = vpack.c.b16 %v1627, %v1619
    %v2180 = vpack.c.b16 %v1628, %v1620
    %v2181 = vpack.c.b16 %v1629, %v1621
    %v2182 = vpack.c.b16 %v1630, %v1622
    %v2183 = vpack.c.b16 %v1631, %v1623
    %v2184 = vpack.c.b16 %v1632, %v1624
    %v2185 = vpack.c.b16 %v1633, %v1625
    %v2186 = vpack.c.b16 %v1634, %v1626
    %v2187 = vpack.c.b16 %v1643, %v1635
    %v2188 = vpack.c.b16 %v1644, %v1636
    %v2189 = vpack.c.b16 %v1645, %v1637
    %v2190 = vpack.c.b16 %v1646, %v1638
    %v2191 = vpack.c.b16 %v1647, %v1639
    %v2192 = vpack.c.b16 %v1648, %v1640
    %v2193 = vpack.c.b16 %v1649, %v1641
    %v2194 = vpack.c.b16 %v1650, %v1642
    %v2195 = vpack.c.b16 %v1659, %v1651
    %v2196 = vpack.c.b16 %v1660, %v1652
    %v2197 = vpack.c.b16 %v1661, %v1653
    %v2198 = vpack.c.b16 %v1662, %v1654
    %v2199 = vpack.c.b16 %v1663, %v1655
    %v2200 = vpack.c.b16 %v1664, %v1656
    %v2201 = vpack.c.b16 %v1665, %v1657
    %v2202 = vpack.c.b16 %v1666, %v1658
    %v2203 = vpack.c.b16 %v1675, %v1667
    %v2204 = vpack.c.b16 %v1676, %v1668
    %v2205 = vpack.c.b16 %v1677, %v1669
    %v2206 = vpack.c.b16 %v1678, %v1670
    %v2207 = vpack.c.b16 %v1679, %v1671
    %v2208 = vpack.c.b16 %v1680, %v1672
    %v2209 = vpack.c.b16 %v1681, %v1673
    %v2210 = vpack.c.b16 %v1682, %v1674
    %v2211 = vpack.c.b16 %v1691, %v1683
    %v2212 = vpack.c.b16 %v1692, %v1684
    %v2213 = vpack.c.b16 %v1693, %v1685
    %v2214 = vpack.c.b16 %v1694, %v1686
    %v2215 = vpack.c.b16 %v1695, %v1687
    %v2216 = vpack.c.b16 %v1696, %v1688
    %v2217 = vpack.c.b16 %v1697, %v1689
    %v2218 = vpack.c.b16 %v1698, %v1690
    %v2219 = vpack.c.b16 %v1707, %v1699
    %v2220 = vpack.c.b16 %v1708, %v1700
    %v2221 = vpack.c.b16 %v1709, %v1701
    %v2222 = vpack.c.b16 %v1710, %v1702
    %v2223 = vpack.c.b16 %v1711, %v1703
    %v2224 = vpack.c.b16 %v1712, %v1704
    %v2225 = vpack.c.b16 %v1713, %v1705
    %v2226 = vpack.c.b16 %v1714, %v1706
    %v2227 = vpack.c.b16 %v1723, %v1715
    %v2228 = vpack.c.b16 %v1724, %v1716
    %v2229 = vpack.c.b16 %v1725, %v1717
    %v2230 = vpack.c.b16 %v1726, %v1718
    %v2231 = vpack.c.b16 %v1727, %v1719
    %v2232 = vpack.c.b16 %v1728, %v1720
    %v2233 = vpack.c.b16 %v1729, %v1721
    %v2234 = vpack.c.b16 %v1730, %v1722
    %v2235 = vpack.c.b16 %v1739, %v1731
    %v2236 = vpack.c.b16 %v1740, %v1732
    %v2237 = vpack.c.b16 %v1741, %v1733
    %v2238 = vpack.c.b16 %v1742, %v1734
    %v2239 = vpack.c.b16 %v1743, %v1735
    %v2240 = vpack.c.b16 %v1744, %v1736
    %v2241 = vpack.c.b16 %v1745, %v1737
    %v2242 = vpack.c.b16 %v1746, %v1738
    %v2243 = vpack.c.b16 %v1755, %v1747
    %v2244 = vpack.c.b16 %v1756, %v1748
    %v2245 = vpack.c.b16 %v1757, %v1749
    %v2246 = vpack.c.b16 %v1758, %v1750
    %v2247 = vpack.c.b16 %v1759, %v1751
    %v2248 = vpack.c.b16 %v1760, %v1752
    %v2249 = vpack.c.b16 %v1761, %v1753
    %v2250 = vpack.c.b16 %v1762, %v1754
    %v2251 = vpack.c.b16 %v1771, %v1763
    %v2252 = vpack.c.b16 %v1772, %v1764
    %v2253 = vpack.c.b16 %v1773, %v1765
    %v2254 = vpack.c.b16 %v1774, %v1766
    %v2255 = vpack.c.b16 %v1775, %v1767
    %v2256 = vpack.c.b16 %v1776, %v1768
    %v2257 = vpack.c.b16 %v1777, %v1769
    %v2258 = vpack.c.b16 %v1778, %v1770
    %v2259 = vpack.c.b16 %v1787, %v1779
    %v2260 = vpack.c.b16 %v1788, %v1780
    %v2261 = vpack.c.b16 %v1789, %v1781
    %v2262 = vpack.c.b16 %v1790, %v1782
    %v2263 = vpack.c.b16 %v1791, %v1783
    %v2264 = vpack.c.b16 %v1792, %v1784
    %v2265 = vpack.c.b16 %v1793, %v1785
    %v2266 = vpack.c.b16 %v1794, %v1786
    %v2267 = vpack.c.b16 %v1803, %v1795
    %v2268 = vpack.c.b16 %v1804, %v1796
    %v2269 = vpack.c.b16 %v1805, %v1797
    %v2270 = vpack.c.b16 %v1806, %v1798
    %v2271 = vpack.c.b16 %v1807, %v1799
    %v2272 = vpack.c.b16 %v1808, %v1800
    %v2273 = vpack.c.b16 %v1809, %v1801
    %v2274 = vpack.c.b16 %v1810, %v1802
    %v2275 = vpack.c.b16 %v1819, %v1811
    %v2276 = vpack.c.b16 %v1820, %v1812
    %v2277 = vpack.c.b16 %v1821, %v1813
    %v2278 = vpack.c.b16 %v1822, %v1814
    %v2279 = vpack.c.b16 %v1823, %v1815
    %v2280 = vpack.c.b16 %v1824, %v1816
    %v2281 = vpack.c.b16 %v1825, %v1817
    %v2282 = vpack.c.b16 %v1826, %v1818
    %v2283 = vpack.c.b16 %v1835, %v1827
    %v2284 = vpack.c.b16 %v1836, %v1828
    %v2285 = vpack.c.b16 %v1837, %v1829
    %v2286 = vpack.c.b16 %v1838, %v1830
    %v2287 = vpack.c.b16 %v1839, %v1831
    %v2288 = vpack.c.b16 %v1840, %v1832
    %v2289 = vpack.c.b16 %v1841, %v1833
    %v2290 = vpack.c.b16 %v1842, %v1834
    %v2291 = vpack.c.b16 %v1851, %v1843
    %v2292 = vpack.c.b16 %v1852, %v1844
    %v2293 = vpack.c.b16 %v1853, %v1845
    %v2294 = vpack.c.b16 %v1854, %v1846
    %v2295 = vpack.c.b16 %v1855, %v1847
    %v2296 = vpack.c.b16 %v1856, %v1848
    %v2297 = vpack.c.b16 %v1857, %v1849
    %v2298 = vpack.c.b16 %v1858, %v1850
    %v2299 = vpack.c.b16 %v1867, %v1859
    %v2300 = vpack.c.b16 %v1868, %v1860
    %v2301 = vpack.c.b16 %v1869, %v1861
    %v2302 = vpack.c.b16 %v1870, %v1862
    %v2303 = vpack.c.b16 %v1871, %v1863
    %v2304 = vpack.c.b16 %v1872, %v1864
    %v2305 = vpack.c.b16 %v1873, %v1865
    %v2306 = vpack.c.b16 %v1874, %v1866
    %v2307 = vpack.c.b16 %v1883, %v1875
    %v2308 = vpack.c.b16 %v1884, %v1876
    %v2309 = vpack.c.b16 %v1885, %v1877
    %v2310 = vpack.c.b16 %v1886, %v1878
    %v2311 = vpack.c.b16 %v1887, %v1879
    %v2312 = vpack.c.b16 %v1888, %v1880
    %v2313 = vpack.c.b16 %v1889, %v1881
    %v2314 = vpack.c.b16 %v1890, %v1882
    %v2315 = vpack.c.b16 %v1899, %v1891
    %v2316 = vpack.c.b16 %v1900, %v1892
    %v2317 = vpack.c.b16 %v1901, %v1893
    %v2318 = vpack.c.b16 %v1902, %v1894
    %v2319 = vpack.c.b16 %v1903, %v1895
    %v2320 = vpack.c.b16 %v1904, %v1896
    %v2321 = vpack.c.b16 %v1905, %v1897
    %v2322 = vpack.c.b16 %v1906, %v1898
    %v2323 = vpack.c.b16 %v1915, %v1907
    %v2324 = vpack.c.b16 %v1916, %v1908
    %v2325 = vpack.c.b16 %v1917, %v1909
    %v2326 = vpack.c.b16 %v1918, %v1910
    %v2327 = vpack.c.b16 %v1919, %v1911
    %v2328 = vpack.c.b16 %v1920, %v1912
    %v2329 = vpack.c.b16 %v1921, %v1913
    %v2330 = vpack.c.b16 %v1922, %v1914
    %v2331 = vpack.c.b16 %v1931, %v1923
    %v2332 = vpack.c.b16 %v1932, %v1924
    %v2333 = vpack.c.b16 %v1933, %v1925
    %v2334 = vpack.c.b16 %v1934, %v1926
    %v2335 = vpack.c.b16 %v1935, %v1927
    %v2336 = vpack.c.b16 %v1936, %v1928
    %v2337 = vpack.c.b16 %v1937, %v1929
    %v2338 = vpack.c.b16 %v1938, %v1930
    %v2339 = vpack.c.b16 %v1947, %v1939
    %v2340 = vpack.c.b16 %v1948, %v1940
    %v2341 = vpack.c.b16 %v1949, %v1941
    %v2342 = vpack.c.b16 %v1950, %v1942
    %v2343 = vpack.c.b16 %v1951, %v1943
    %v2344 = vpack.c.b16 %v1952, %v1944
    %v2345 = vpack.c.b16 %v1953, %v1945
    %v2346 = vpack.c.b16 %v1954, %v1946
    %v2347 = vpack.c.b16 %v1963, %v1955
    %v2348 = vpack.c.b16 %v1964, %v1956
    %v2349 = vpack.c.b16 %v1965, %v1957
    %v2350 = vpack.c.b16 %v1966, %v1958
    %v2351 = vpack.c.b16 %v1967, %v1959
    %v2352 = vpack.c.b16 %v1968, %v1960
    %v2353 = vpack.c.b16 %v1969, %v1961
    %v2354 = vpack.c.b16 %v1970, %v1962
    %v2355 = vpack.c.b16 %v1979, %v1971
    %v2356 = vpack.c.b16 %v1980, %v1972
    %v2357 = vpack.c.b16 %v1981, %v1973
    %v2358 = vpack.c.b16 %v1982, %v1974
    %v2359 = vpack.c.b16 %v1983, %v1975
    %v2360 = vpack.c.b16 %v1984, %v1976
    %v2361 = vpack.c.b16 %v1985, %v1977
    %v2362 = vpack.c.b16 %v1986, %v1978
    %v2363 = vpack.c.b16 %v1995, %v1987
    %v2364 = vpack.c.b16 %v1996, %v1988
    %v2365 = vpack.c.b16 %v1997, %v1989
    %v2366 = vpack.c.b16 %v1998, %v1990
    %v2367 = vpack.c.b16 %v1999, %v1991
    %v2368 = vpack.c.b16 %v2000, %v1992
    %v2369 = vpack.c.b16 %v2001, %v1993
    %v2370 = vpack.c.b16 %v2002, %v1994
    %v2371 = vpack.c.b16 %v2011, %v2003
    %v2372 = vpack.c.b16 %v2012, %v2004
    %v2373 = vpack.c.b16 %v2013, %v2005
    %v2374 = vpack.c.b16 %v2014, %v2006
    %v2375 = vpack.c.b16 %v2015, %v2007
    %v2376 = vpack.c.b16 %v2016, %v2008
    %v2377 = vpack.c.b16 %v2017, %v2009
    %v2378 = vpack.c.b16 %v2018, %v2010
    %v2379 = vpack.c.b16 %v2027, %v2019
    %v2380 = vpack.c.b16 %v2028, %v2020
    %v2381 = vpack.c.b16 %v2029, %v2021
    %v2382 = vpack.c.b16 %v2030, %v2022
    %v2383 = vpack.c.b16 %v2031, %v2023
    %v2384 = vpack.c.b16 %v2032, %v2024
    %v2385 = vpack.c.b16 %v2033, %v2025
    %v2386 = vpack.c.b16 %v2034, %v2026
    %v2387 = vpack.c.b16 %v2043, %v2035
    %v2388 = vpack.c.b16 %v2044, %v2036
    %v2389 = vpack.c.b16 %v2045, %v2037
    %v2390 = vpack.c.b16 %v2046, %v2038
    %v2391 = vpack.c.b16 %v2047, %v2039
    %v2392 = vpack.c.b16 %v2048, %v2040
    %v2393 = vpack.c.b16 %v2049, %v2041
    %v2394 = vpack.c.b16 %v2050, %v2042
    %v2395 = vpack.c.b16 %v2059, %v2051
    %v2396 = vpack.c.b16 %v2060, %v2052
    %v2397 = vpack.c.b16 %v2061, %v2053
    %v2398 = vpack.c.b16 %v2062, %v2054
    %v2399 = vpack.c.b16 %v2063, %v2055
    %v2400 = vpack.c.b16 %v2064, %v2056
    %v2401 = vpack.c.b16 %v2065, %v2057
    %v2402 = vpack.c.b16 %v2066, %v2058
    %v2403 = vpack.c.b16 %v2075, %v2067
    %v2404 = vpack.c.b16 %v2076, %v2068
    %v2405 = vpack.c.b16 %v2077, %v2069
    %v2406 = vpack.c.b16 %v2078, %v2070
    %v2407 = vpack.c.b16 %v2079, %v2071
    %v2408 = vpack.c.b16 %v2080, %v2072
    %v2409 = vpack.c.b16 %v2081, %v2073
    %v2410 = vpack.c.b16 %v2082, %v2074
    %v2411 = vpack.c.b16 %v2091, %v2083
    %v2412 = vpack.c.b16 %v2092, %v2084
    %v2413 = vpack.c.b16 %v2093, %v2085
    %v2414 = vpack.c.b16 %v2094, %v2086
    %v2415 = vpack.c.b16 %v2095, %v2087
    %v2416 = vpack.c.b16 %v2096, %v2088
    %v2417 = vpack.c.b16 %v2097, %v2089
    %v2418 = vpack.c.b16 %v2098, %v2090
    %2739 = vmatprep.subr.bf16.mxu0 %v2100
    %2740 = vmatpush1.bf16.msra.mxu0 %v2099
    %2741 = vmatprep.subr.bf16.mxu0 %v2108
    %2742 = vmatpush1.bf16.msra.mxu0 %v2107
    %2743 = vmatprep.subr.bf16.mxu0 %v2116
    %2744 = vmatpush1.bf16.msra.mxu0 %v2115
    %2745 = vmatprep.subr.bf16.mxu0 %v2124
    %2746 = vmatpush1.bf16.msra.mxu0 %v2123
    %2747 = vmatprep.subr.bf16.mxu0 %v2132
    %2748 = vmatpush1.bf16.msra.mxu0 %v2131
    %2749 = vmatprep.subr.bf16.mxu0 %v2140
    %2750 = vmatpush1.bf16.msra.mxu0 %v2139
    %2751 = vmatprep.subr.bf16.mxu0 %v2148
    %2752 = vmatpush1.bf16.msra.mxu0 %v2147
    %2753 = vmatprep.subr.bf16.mxu0 %v2156
    %2754 = vmatpush1.bf16.msra.mxu0 %v2155
    %2755 = vmatprep.subr.bf16.mxu0 %v2164
    %2756 = vmatpush1.bf16.msra.mxu0 %v2163
    %2757 = vmatprep.subr.bf16.mxu0 %v2172
    %2758 = vmatpush1.bf16.msra.mxu0 %v2171
    %2759 = vmatprep.subr.bf16.mxu0 %v2180
    %2760 = vmatpush1.bf16.msra.mxu0 %v2179
    %2761 = vmatprep.subr.bf16.mxu0 %v2188
    %2762 = vmatpush1.bf16.msra.mxu0 %v2187
    %2763 = vmatprep.subr.bf16.mxu0 %v2196
    %2764 = vmatpush1.bf16.msra.mxu0 %v2195
    %2765 = vmatprep.subr.bf16.mxu0 %v2204
    %2766 = vmatpush1.bf16.msra.mxu0 %v2203
    %2767 = vmatprep.subr.bf16.mxu0 %v2212
    %2768 = vmatpush1.bf16.msra.mxu0 %v2211
    %2769 = vmatprep.subr.bf16.mxu0 %v2220
    %2770 = vmatpush1.bf16.msra.mxu0 %v2219
    %2771 = vmatprep.mubr.bf16.mxu0 %v773
    %2772 = vmatmul.mubr.bf16.gmra.mrb[0].mxu0 %v772
    %v2773 = vpop.f32.mrb[0].mxu0
    %v2774 = vadd.f32 %v1102, %v2773
    %v2775 = vpop.f32.mrb[0].mxu0
    %v2776 = vadd.f32 %v1106, %v2775
    %v2777 = vpop.f32.mrb[0].mxu0
    %v2778 = vpop.f32.mrb[0].mxu0
    %2779 = vdwg.mxu0
    %2780 = vmatprep.subr.bf16.mxu0 %v2228
    %2781 = vmatpush1.bf16.msra.mxu0 %v2227
    %2782 = vmatprep.subr.bf16.mxu0 %v2236
    %2783 = vmatpush1.bf16.msra.mxu0 %v2235
    %2784 = vmatprep.subr.bf16.mxu0 %v2244
    %2785 = vmatpush1.bf16.msra.mxu0 %v2243
    %2786 = vmatprep.subr.bf16.mxu0 %v2252
    %2787 = vmatpush1.bf16.msra.mxu0 %v2251
    %2788 = vmatprep.subr.bf16.mxu0 %v2260
    %2789 = vmatpush1.bf16.msra.mxu0 %v2259
    %2790 = vmatprep.subr.bf16.mxu0 %v2268
    %2791 = vmatpush1.bf16.msra.mxu0 %v2267
    %2792 = vmatprep.subr.bf16.mxu0 %v2276
    %2793 = vmatpush1.bf16.msra.mxu0 %v2275
    %2794 = vmatprep.subr.bf16.mxu0 %v2284
    %2795 = vmatpush1.bf16.msra.mxu0 %v2283
    %2796 = vmatprep.subr.bf16.mxu0 %v2292
    %2797 = vmatpush1.bf16.msra.mxu0 %v2291
    %2798 = vmatprep.subr.bf16.mxu0 %v2300
    %2799 = vmatpush1.bf16.msra.mxu0 %v2299
    %2800 = vmatprep.subr.bf16.mxu0 %v2308
    %2801 = vmatpush1.bf16.msra.mxu0 %v2307
    %2802 = vmatprep.subr.bf16.mxu0 %v2316
    %2803 = vmatpush1.bf16.msra.mxu0 %v2315
    %2804 = vmatprep.subr.bf16.mxu0 %v2324
    %2805 = vmatpush1.bf16.msra.mxu0 %v2323
    %2806 = vmatprep.subr.bf16.mxu0 %v2332
    %2807 = vmatpush1.bf16.msra.mxu0 %v2331
    %2808 = vmatprep.subr.bf16.mxu0 %v2340
    %2809 = vmatpush1.bf16.msra.mxu0 %v2339
    %2810 = vmatprep.subr.bf16.mxu0 %v2348
    %2811 = vmatpush1.bf16.msra.mxu0 %v2347
    %2812 = vmatprep.mubr.bf16.mxu0 %v775
    %2813 = vmatmul.mubr.bf16.gmra.mrb[0].mxu0 %v774
    %v2814 = vpop.f32.mrb[0].mxu0
    %v2815 = vadd.f32 %v2774, %v2814
    %v2816 = vpop.f32.mrb[0].mxu0
    %v2817 = vadd.f32 %v2776, %v2816
    %v2818 = vpop.f32.mrb[0].mxu0
    %v2819 = vpop.f32.mrb[0].mxu0
    %2820 = vdwg.mxu0
    %2821 = vmatprep.subr.bf16.mxu0 %v2356
    %2822 = vmatpush1.bf16.msra.mxu0 %v2355
    %2823 = vmatprep.subr.bf16.mxu0 %v2364
    %2824 = vmatpush1.bf16.msra.mxu0 %v2363
    %2825 = vmatprep.subr.bf16.mxu0 %v2372
    %2826 = vmatpush1.bf16.msra.mxu0 %v2371
    %2827 = vmatprep.subr.bf16.mxu0 %v2380
    %2828 = vmatpush1.bf16.msra.mxu0 %v2379
    %2829 = vmatprep.subr.bf16.mxu0 %v2388
    %2830 = vmatpush1.bf16.msra.mxu0 %v2387
    %2831 = vmatprep.subr.bf16.mxu0 %v2396
    %2832 = vmatpush1.bf16.msra.mxu0 %v2395
    %2833 = vmatprep.subr.bf16.mxu0 %v2404
    %2834 = vmatpush1.bf16.msra.mxu0 %v2403
    %2835 = vmatprep.subr.bf16.mxu0 %v2412
    %2836 = vmatpush1.bf16.msra.mxu0 %v2411
    %2837 = vmatprep.subr.bf16.mxu0 0
    %2838 = vmatpush1.bf16.msra.mxu0 0
    %2839 = vmatprep.subr.bf16.mxu0 0
    %2840 = vmatpush1.bf16.msra.mxu0 0
    %2841 = vmatprep.subr.bf16.mxu0 0
    %2842 = vmatpush1.bf16.msra.mxu0 0
    %2843 = vmatprep.subr.bf16.mxu0 0
    %2844 = vmatpush1.bf16.msra.mxu0 0
    %2845 = vmatprep.subr.bf16.mxu0 0
    %2846 = vmatpush1.bf16.msra.mxu0 0
    %2847 = vmatprep.subr.bf16.mxu0 0
    %2848 = vmatpush1.bf16.msra.mxu0 0
    %2849 = vmatprep.subr.bf16.mxu0 0
    %2850 = vmatpush1.bf16.msra.mxu0 0
    %2851 = vmatprep.subr.bf16.mxu0 0
    %2852 = vmatpush1.bf16.msra.mxu0 0
    %2853 = vmatprep.mubr.bf16.mxu0 0
    %2854 = vmatmul.mubr.bf16.gmra.mrb[0].mxu0 %v776
    %v2855 = vpop.f32.mrb[0].mxu0
    %v2856 = vadd.f32 %v2815, %v2855
    %v2857 = vpop.f32.mrb[0].mxu0
    %v2858 = vadd.f32 %v2817, %v2857
    %v2859 = vpop.f32.mrb[0].mxu0
    %v2860 = vpop.f32.mrb[0].mxu0
    %2861 = vdwg.mxu0
    %2862 = vmatprep.subr.bf16.mxu0 %v2102
    %2863 = vmatpush1.bf16.msra.mxu0 %v2101
    %2864 = vmatprep.subr.bf16.mxu0 %v2110
    %2865 = vmatpush1.bf16.msra.mxu0 %v2109
    %2866 = vmatprep.subr.bf16.mxu0 %v2118
    %2867 = vmatpush1.bf16.msra.mxu0 %v2117
    %2868 = vmatprep.subr.bf16.mxu0 %v2126
    %2869 = vmatpush1.bf16.msra.mxu0 %v2125
    %2870 = vmatprep.subr.bf16.mxu0 %v2134
    %2871 = vmatpush1.bf16.msra.mxu0 %v2133
    %2872 = vmatprep.subr.bf16.mxu0 %v2142
    %2873 = vmatpush1.bf16.msra.mxu0 %v2141
    %2874 = vmatprep.subr.bf16.mxu0 %v2150
    %2875 = vmatpush1.bf16.msra.mxu0 %v2149
    %2876 = vmatprep.subr.bf16.mxu0 %v2158
    %2877 = vmatpush1.bf16.msra.mxu0 %v2157
    %2878 = vmatprep.subr.bf16.mxu0 %v2166
    %2879 = vmatpush1.bf16.msra.mxu0 %v2165
    %2880 = vmatprep.subr.bf16.mxu0 %v2174
    %2881 = vmatpush1.bf16.msra.mxu0 %v2173
    %2882 = vmatprep.subr.bf16.mxu0 %v2182
    %2883 = vmatpush1.bf16.msra.mxu0 %v2181
    %2884 = vmatprep.subr.bf16.mxu0 %v2190
    %2885 = vmatpush1.bf16.msra.mxu0 %v2189
    %2886 = vmatprep.subr.bf16.mxu0 %v2198
    %2887 = vmatpush1.bf16.msra.mxu0 %v2197
    %2888 = vmatprep.subr.bf16.mxu0 %v2206
    %2889 = vmatpush1.bf16.msra.mxu0 %v2205
    %2890 = vmatprep.subr.bf16.mxu0 %v2214
    %2891 = vmatpush1.bf16.msra.mxu0 %v2213
    %2892 = vmatprep.subr.bf16.mxu0 %v2222
    %2893 = vmatpush1.bf16.msra.mxu0 %v2221
    %2894 = vmatprep.mubr.bf16.mxu0 %v773
    %2895 = vmatmul.mubr.bf16.gmra.mrb[0].mxu0 %v772
    %v2896 = vpop.f32.mrb[0].mxu0
    %v2897 = vadd.f32 %v1110, %v2896
    %v2898 = vpop.f32.mrb[0].mxu0
    %v2899 = vadd.f32 %v1114, %v2898
    %v2900 = vpop.f32.mrb[0].mxu0
    %v2901 = vpop.f32.mrb[0].mxu0
    %2902 = vdwg.mxu0
    %2903 = vmatprep.subr.bf16.mxu0 %v2230
    %2904 = vmatpush1.bf16.msra.mxu0 %v2229
    %2905 = vmatprep.subr.bf16.mxu0 %v2238
    %2906 = vmatpush1.bf16.msra.mxu0 %v2237
    %2907 = vmatprep.subr.bf16.mxu0 %v2246
    %2908 = vmatpush1.bf16.msra.mxu0 %v2245
    %2909 = vmatprep.subr.bf16.mxu0 %v2254
    %2910 = vmatpush1.bf16.msra.mxu0 %v2253
    %2911 = vmatprep.subr.bf16.mxu0 %v2262
    %2912 = vmatpush1.bf16.msra.mxu0 %v2261
    %2913 = vmatprep.subr.bf16.mxu0 %v2270
    %2914 = vmatpush1.bf16.msra.mxu0 %v2269
    %2915 = vmatprep.subr.bf16.mxu0 %v2278
    %2916 = vmatpush1.bf16.msra.mxu0 %v2277
    %2917 = vmatprep.subr.bf16.mxu0 %v2286
    %2918 = vmatpush1.bf16.msra.mxu0 %v2285
    %2919 = vmatprep.subr.bf16.mxu0 %v2294
    %2920 = vmatpush1.bf16.msra.mxu0 %v2293
    %2921 = vmatprep.subr.bf16.mxu0 %v2302
    %2922 = vmatpush1.bf16.msra.mxu0 %v2301
    %2923 = vmatprep.subr.bf16.mxu0 %v2310
    %2924 = vmatpush1.bf16.msra.mxu0 %v2309
    %2925 = vmatprep.subr.bf16.mxu0 %v2318
    %2926 = vmatpush1.bf16.msra.mxu0 %v2317
    %2927 = vmatprep.subr.bf16.mxu0 %v2326
    %2928 = vmatpush1.bf16.msra.mxu0 %v2325
    %2929 = vmatprep.subr.bf16.mxu0 %v2334
    %2930 = vmatpush1.bf16.msra.mxu0 %v2333
    %2931 = vmatprep.subr.bf16.mxu0 %v2342
    %2932 = vmatpush1.bf16.msra.mxu0 %v2341
    %2933 = vmatprep.subr.bf16.mxu0 %v2350
    %2934 = vmatpush1.bf16.msra.mxu0 %v2349
    %2935 = vmatprep.mubr.bf16.mxu0 %v775
    %2936 = vmatmul.mubr.bf16.gmra.mrb[0].mxu0 %v774
    %v2937 = vpop.f32.mrb[0].mxu0
    %v2938 = vadd.f32 %v2897, %v2937
    %v2939 = vpop.f32.mrb[0].mxu0
    %v2940 = vadd.f32 %v2899, %v2939
    %v2941 = vpop.f32.mrb[0].mxu0
    %v2942 = vpop.f32.mrb[0].mxu0
    %2943 = vdwg.mxu0
    %2944 = vmatprep.subr.bf16.mxu0 %v2358
    %2945 = vmatpush1.bf16.msra.mxu0 %v2357
    %2946 = vmatprep.subr.bf16.mxu0 %v2366
    %2947 = vmatpush1.bf16.msra.mxu0 %v2365
    %2948 = vmatprep.subr.bf16.mxu0 %v2374
    %2949 = vmatpush1.bf16.msra.mxu0 %v2373
    %2950 = vmatprep.subr.bf16.mxu0 %v2382
    %2951 = vmatpush1.bf16.msra.mxu0 %v2381
    %2952 = vmatprep.subr.bf16.mxu0 %v2390
    %2953 = vmatpush1.bf16.msra.mxu0 %v2389
    %2954 = vmatprep.subr.bf16.mxu0 %v2398
    %2955 = vmatpush1.bf16.msra.mxu0 %v2397
    %2956 = vmatprep.subr.bf16.mxu0 %v2406
    %2957 = vmatpush1.bf16.msra.mxu0 %v2405
    %2958 = vmatprep.subr.bf16.mxu0 %v2414
    %2959 = vmatpush1.bf16.msra.mxu0 %v2413
    %2960 = vmatprep.subr.bf16.mxu0 0
    %2961 = vmatpush1.bf16.msra.mxu0 0
    %2962 = vmatprep.subr.bf16.mxu0 0
    %2963 = vmatpush1.bf16.msra.mxu0 0
    %2964 = vmatprep.subr.bf16.mxu0 0
    %2965 = vmatpush1.bf16.msra.mxu0 0
    %2966 = vmatprep.subr.bf16.mxu0 0
    %2967 = vmatpush1.bf16.msra.mxu0 0
    %2968 = vmatprep.subr.bf16.mxu0 0
    %2969 = vmatpush1.bf16.msra.mxu0 0
    %2970 = vmatprep.subr.bf16.mxu0 0
    %2971 = vmatpush1.bf16.msra.mxu0 0
    %2972 = vmatprep.subr.bf16.mxu0 0
    %2973 = vmatpush1.bf16.msra.mxu0 0
    %2974 = vmatprep.subr.bf16.mxu0 0
    %2975 = vmatpush1.bf16.msra.mxu0 0
    %2976 = vmatprep.mubr.bf16.mxu0 0
    %2977 = vmatmul.mubr.bf16.gmra.mrb[0].mxu0 %v776
    %v2978 = vpop.f32.mrb[0].mxu0
    %v2979 = vadd.f32 %v2938, %v2978
    %v2980 = vpop.f32.mrb[0].mxu0
    %v2981 = vadd.f32 %v2940, %v2980
    %v2982 = vpop.f32.mrb[0].mxu0
    %v2983 = vpop.f32.mrb[0].mxu0
    %2984 = vdwg.mxu0
    %2985 = vmatprep.subr.bf16.mxu0 %v2104
    %2986 = vmatpush1.bf16.msra.mxu0 %v2103
    %2987 = vmatprep.subr.bf16.mxu0 %v2112
    %2988 = vmatpush1.bf16.msra.mxu0 %v2111
    %2989 = vmatprep.subr.bf16.mxu0 %v2120
    %2990 = vmatpush1.bf16.msra.mxu0 %v2119
    %2991 = vmatprep.subr.bf16.mxu0 %v2128
    %2992 = vmatpush1.bf16.msra.mxu0 %v2127
    %2993 = vmatprep.subr.bf16.mxu0 %v2136
    %2994 = vmatpush1.bf16.msra.mxu0 %v2135
    %2995 = vmatprep.subr.bf16.mxu0 %v2144
    %2996 = vmatpush1.bf16.msra.mxu0 %v2143
    %2997 = vmatprep.subr.bf16.mxu0 %v2152
    %2998 = vmatpush1.bf16.msra.mxu0 %v2151
    %2999 = vmatprep.subr.bf16.mxu0 %v2160
    %3000 = vmatpush1.bf16.msra.mxu0 %v2159
    %3001 = vmatprep.subr.bf16.mxu0 %v2168
    %3002 = vmatpush1.bf16.msra.mxu0 %v2167
    %3003 = vmatprep.subr.bf16.mxu0 %v2176
    %3004 = vmatpush1.bf16.msra.mxu0 %v2175
    %3005 = vmatprep.subr.bf16.mxu0 %v2184
    %3006 = vmatpush1.bf16.msra.mxu0 %v2183
    %3007 = vmatprep.subr.bf16.mxu0 %v2192
    %3008 = vmatpush1.bf16.msra.mxu0 %v2191
    %3009 = vmatprep.subr.bf16.mxu0 %v2200
    %3010 = vmatpush1.bf16.msra.mxu0 %v2199
    %3011 = vmatprep.subr.bf16.mxu0 %v2208
    %3012 = vmatpush1.bf16.msra.mxu0 %v2207
    %3013 = vmatprep.subr.bf16.mxu0 %v2216
    %3014 = vmatpush1.bf16.msra.mxu0 %v2215
    %3015 = vmatprep.subr.bf16.mxu0 %v2224
    %3016 = vmatpush1.bf16.msra.mxu0 %v2223
    %3017 = vmatprep.mubr.bf16.mxu0 %v773
    %3018 = vmatmul.mubr.bf16.gmra.mrb[0].mxu0 %v772
    %v3019 = vpop.f32.mrb[0].mxu0
    %v3020 = vadd.f32 %v1118, %v3019
    %v3021 = vpop.f32.mrb[0].mxu0
    %v3022 = vadd.f32 %v1122, %v3021
    %v3023 = vpop.f32.mrb[0].mxu0
    %v3024 = vpop.f32.mrb[0].mxu0
    %3025 = vdwg.mxu0
    %3026 = vmatprep.subr.bf16.mxu0 %v2232
    %3027 = vmatpush1.bf16.msra.mxu0 %v2231
    %3028 = vmatprep.subr.bf16.mxu0 %v2240
    %3029 = vmatpush1.bf16.msra.mxu0 %v2239
    %3030 = vmatprep.subr.bf16.mxu0 %v2248
    %3031 = vmatpush1.bf16.msra.mxu0 %v2247
    %3032 = vmatprep.subr.bf16.mxu0 %v2256
    %3033 = vmatpush1.bf16.msra.mxu0 %v2255
    %3034 = vmatprep.subr.bf16.mxu0 %v2264
    %3035 = vmatpush1.bf16.msra.mxu0 %v2263
    %3036 = vmatprep.subr.bf16.mxu0 %v2272
    %3037 = vmatpush1.bf16.msra.mxu0 %v2271
    %3038 = vmatprep.subr.bf16.mxu0 %v2280
    %3039 = vmatpush1.bf16.msra.mxu0 %v2279
    %3040 = vmatprep.subr.bf16.mxu0 %v2288
    %3041 = vmatpush1.bf16.msra.mxu0 %v2287
    %3042 = vmatprep.subr.bf16.mxu0 %v2296
    %3043 = vmatpush1.bf16.msra.mxu0 %v2295
    %3044 = vmatprep.subr.bf16.mxu0 %v2304
    %3045 = vmatpush1.bf16.msra.mxu0 %v2303
    %3046 = vmatprep.subr.bf16.mxu0 %v2312
    %3047 = vmatpush1.bf16.msra.mxu0 %v2311
    %3048 = vmatprep.subr.bf16.mxu0 %v2320
    %3049 = vmatpush1.bf16.msra.mxu0 %v2319
    %3050 = vmatprep.subr.bf16.mxu0 %v2328
    %3051 = vmatpush1.bf16.msra.mxu0 %v2327
    %3052 = vmatprep.subr.bf16.mxu0 %v2336
    %3053 = vmatpush1.bf16.msra.mxu0 %v2335
    %3054 = vmatprep.subr.bf16.mxu0 %v2344
    %3055 = vmatpush1.bf16.msra.mxu0 %v2343
    %3056 = vmatprep.subr.bf16.mxu0 %v2352
    %3057 = vmatpush1.bf16.msra.mxu0 %v2351
    %3058 = vmatprep.mubr.bf16.mxu0 %v775
    %3059 = vmatmul.mubr.bf16.gmra.mrb[0].mxu0 %v774
    %v3060 = vpop.f32.mrb[0].mxu0
    %v3061 = vadd.f32 %v3020, %v3060
    %v3062 = vpop.f32.mrb[0].mxu0
    %v3063 = vadd.f32 %v3022, %v3062
    %v3064 = vpop.f32.mrb[0].mxu0
    %v3065 = vpop.f32.mrb[0].mxu0
    %3066 = vdwg.mxu0
    %3067 = vmatprep.subr.bf16.mxu0 %v2360
    %3068 = vmatpush1.bf16.msra.mxu0 %v2359
    %3069 = vmatprep.subr.bf16.mxu0 %v2368
    %3070 = vmatpush1.bf16.msra.mxu0 %v2367
    %3071 = vmatprep.subr.bf16.mxu0 %v2376
    %3072 = vmatpush1.bf16.msra.mxu0 %v2375
    %3073 = vmatprep.subr.bf16.mxu0 %v2384
    %3074 = vmatpush1.bf16.msra.mxu0 %v2383
    %3075 = vmatprep.subr.bf16.mxu0 %v2392
    %3076 = vmatpush1.bf16.msra.mxu0 %v2391
    %3077 = vmatprep.subr.bf16.mxu0 %v2400
    %3078 = vmatpush1.bf16.msra.mxu0 %v2399
    %3079 = vmatprep.subr.bf16.mxu0 %v2408
    %3080 = vmatpush1.bf16.msra.mxu0 %v2407
    %3081 = vmatprep.subr.bf16.mxu0 %v2416
    %3082 = vmatpush1.bf16.msra.mxu0 %v2415
    %3083 = vmatprep.subr.bf16.mxu0 0
    %3084 = vmatpush1.bf16.msra.mxu0 0
    %3085 = vmatprep.subr.bf16.mxu0 0
    %3086 = vmatpush1.bf16.msra.mxu0 0
    %3087 = vmatprep.subr.bf16.mxu0 0
    %3088 = vmatpush1.bf16.msra.mxu0 0
    %3089 = vmatprep.subr.bf16.mxu0 0
    %3090 = vmatpush1.bf16.msra.mxu0 0
    %3091 = vmatprep.subr.bf16.mxu0 0
    %3092 = vmatpush1.bf16.msra.mxu0 0
    %3093 = vmatprep.subr.bf16.mxu0 0
    %3094 = vmatpush1.bf16.msra.mxu0 0
    %3095 = vmatprep.subr.bf16.mxu0 0
    %3096 = vmatpush1.bf16.msra.mxu0 0
    %3097 = vmatprep.subr.bf16.mxu0 0
    %3098 = vmatpush1.bf16.msra.mxu0 0
    %3099 = vmatprep.mubr.bf16.mxu0 0
    %3100 = vmatmul.mubr.bf16.gmra.mrb[0].mxu0 %v776
    %v3101 = vpop.f32.mrb[0].mxu0
    %v3102 = vadd.f32 %v3061, %v3101
    %v3103 = vpop.f32.mrb[0].mxu0
    %v3104 = vadd.f32 %v3063, %v3103
    %v3105 = vpop.f32.mrb[0].mxu0
    %v3106 = vpop.f32.mrb[0].mxu0
    %3107 = vdwg.mxu0
    %3108 = vmatprep.subr.bf16.mxu0 %v2106
    %3109 = vmatpush1.bf16.msra.mxu0 %v2105
    %3110 = vmatprep.subr.bf16.mxu0 %v2114
    %3111 = vmatpush1.bf16.msra.mxu0 %v2113
    %3112 = vmatprep.subr.bf16.mxu0 %v2122
    %3113 = vmatpush1.bf16.msra.mxu0 %v2121
    %3114 = vmatprep.subr.bf16.mxu0 %v2130
    %3115 = vmatpush1.bf16.msra.mxu0 %v2129
    %3116 = vmatprep.subr.bf16.mxu0 %v2138
    %3117 = vmatpush1.bf16.msra.mxu0 %v2137
    %3118 = vmatprep.subr.bf16.mxu0 %v2146
    %3119 = vmatpush1.bf16.msra.mxu0 %v2145
    %3120 = vmatprep.subr.bf16.mxu0 %v2154
    %3121 = vmatpush1.bf16.msra.mxu0 %v2153
    %3122 = vmatprep.subr.bf16.mxu0 %v2162
    %3123 = vmatpush1.bf16.msra.mxu0 %v2161
    %3124 = vmatprep.subr.bf16.mxu0 %v2170
    %3125 = vmatpush1.bf16.msra.mxu0 %v2169
    %3126 = vmatprep.subr.bf16.mxu0 %v2178
    %3127 = vmatpush1.bf16.msra.mxu0 %v2177
    %3128 = vmatprep.subr.bf16.mxu0 %v2186
    %3129 = vmatpush1.bf16.msra.mxu0 %v2185
    %3130 = vmatprep.subr.bf16.mxu0 %v2194
    %3131 = vmatpush1.bf16.msra.mxu0 %v2193
    %3132 = vmatprep.subr.bf16.mxu0 %v2202
    %3133 = vmatpush1.bf16.msra.mxu0 %v2201
    %3134 = vmatprep.subr.bf16.mxu0 %v2210
    %3135 = vmatpush1.bf16.msra.mxu0 %v2209
    %3136 = vmatprep.subr.bf16.mxu0 %v2218
    %3137 = vmatpush1.bf16.msra.mxu0 %v2217
    %3138 = vmatprep.subr.bf16.mxu0 %v2226
    %3139 = vmatpush1.bf16.msra.mxu0 %v2225
    %3140 = vmatprep.mubr.bf16.mxu0 %v773
    %3141 = vmatmul.mubr.bf16.gmra.mrb[0].mxu0 %v772
    %v3142 = vpop.f32.mrb[0].mxu0
    %v3143 = vadd.f32 %v1126, %v3142
    %v3144 = vpop.f32.mrb[0].mxu0
    %v3145 = vadd.f32 %v1130, %v3144
    %v3146 = vpop.f32.mrb[0].mxu0
    %v3147 = vpop.f32.mrb[0].mxu0
    %3148 = vdwg.mxu0
    %3149 = vmatprep.subr.bf16.mxu0 %v2234
    %3150 = vmatpush1.bf16.msra.mxu0 %v2233
    %3151 = vmatprep.subr.bf16.mxu0 %v2242
    %3152 = vmatpush1.bf16.msra.mxu0 %v2241
    %3153 = vmatprep.subr.bf16.mxu0 %v2250
    %3154 = vmatpush1.bf16.msra.mxu0 %v2249
    %3155 = vmatprep.subr.bf16.mxu0 %v2258
    %3156 = vmatpush1.bf16.msra.mxu0 %v2257
    %3157 = vmatprep.subr.bf16.mxu0 %v2266
    %3158 = vmatpush1.bf16.msra.mxu0 %v2265
    %3159 = vmatprep.subr.bf16.mxu0 %v2274
    %3160 = vmatpush1.bf16.msra.mxu0 %v2273
    %3161 = vmatprep.subr.bf16.mxu0 %v2282
    %3162 = vmatpush1.bf16.msra.mxu0 %v2281
    %3163 = vmatprep.subr.bf16.mxu0 %v2290
    %3164 = vmatpush1.bf16.msra.mxu0 %v2289
    %3165 = vmatprep.subr.bf16.mxu0 %v2298
    %3166 = vmatpush1.bf16.msra.mxu0 %v2297
    %3167 = vmatprep.subr.bf16.mxu0 %v2306
    %3168 = vmatpush1.bf16.msra.mxu0 %v2305
    %3169 = vmatprep.subr.bf16.mxu0 %v2314
    %3170 = vmatpush1.bf16.msra.mxu0 %v2313
    %3171 = vmatprep.subr.bf16.mxu0 %v2322
    %3172 = vmatpush1.bf16.msra.mxu0 %v2321
    %3173 = vmatprep.subr.bf16.mxu0 %v2330
    %3174 = vmatpush1.bf16.msra.mxu0 %v2329
    %3175 = vmatprep.subr.bf16.mxu0 %v2338
    %3176 = vmatpush1.bf16.msra.mxu0 %v2337
    %3177 = vmatprep.subr.bf16.mxu0 %v2346
    %3178 = vmatpush1.bf16.msra.mxu0 %v2345
    %3179 = vmatprep.subr.bf16.mxu0 %v2354
    %3180 = vmatpush1.bf16.msra.mxu0 %v2353
    %3181 = vmatprep.mubr.bf16.mxu0 %v775
    %3182 = vmatmul.mubr.bf16.gmra.mrb[0].mxu0 %v774
    %v3183 = vpop.f32.mrb[0].mxu0
    %v3184 = vadd.f32 %v3143, %v3183
    %v3185 = vpop.f32.mrb[0].mxu0
    %v3186 = vadd.f32 %v3145, %v3185
    %v3187 = vpop.f32.mrb[0].mxu0
    %v3188 = vpop.f32.mrb[0].mxu0
    %3189 = vdwg.mxu0
    %3190 = vmatprep.subr.bf16.mxu0 %v2362
    %3191 = vmatpush1.bf16.msra.mxu0 %v2361
    %3192 = vmatprep.subr.bf16.mxu0 %v2370
    %3193 = vmatpush1.bf16.msra.mxu0 %v2369
    %3194 = vmatprep.subr.bf16.mxu0 %v2378
    %3195 = vmatpush1.bf16.msra.mxu0 %v2377
    %3196 = vmatprep.subr.bf16.mxu0 %v2386
    %3197 = vmatpush1.bf16.msra.mxu0 %v2385
    %3198 = vmatprep.subr.bf16.mxu0 %v2394
    %3199 = vmatpush1.bf16.msra.mxu0 %v2393
    %3200 = vmatprep.subr.bf16.mxu0 %v2402
    %3201 = vmatpush1.bf16.msra.mxu0 %v2401
    %3202 = vmatprep.subr.bf16.mxu0 %v2410
    %3203 = vmatpush1.bf16.msra.mxu0 %v2409
    %3204 = vmatprep.subr.bf16.mxu0 %v2418
    %3205 = vmatpush1.bf16.msra.mxu0 %v2417
    %3206 = vmatprep.subr.bf16.mxu0 0
    %3207 = vmatpush1.bf16.msra.mxu0 0
    %3208 = vmatprep.subr.bf16.mxu0 0
    %3209 = vmatpush1.bf16.msra.mxu0 0
    %3210 = vmatprep.subr.bf16.mxu0 0
    %3211 = vmatpush1.bf16.msra.mxu0 0
    %3212 = vmatprep.subr.bf16.mxu0 0
    %3213 = vmatpush1.bf16.msra.mxu0 0
    %3214 = vmatprep.subr.bf16.mxu0 0
    %3215 = vmatpush1.bf16.msra.mxu0 0
    %3216 = vmatprep.subr.bf16.mxu0 0
    %3217 = vmatpush1.bf16.msra.mxu0 0
    %3218 = vmatprep.subr.bf16.mxu0 0
    %3219 = vmatpush1.bf16.msra.mxu0 0
    %3220 = vmatprep.subr.bf16.mxu0 0
    %3221 = vmatpush1.bf16.msra.mxu0 0
    %3222 = vmatprep.mubr.bf16.mxu0 0
    %3223 = vmatmul.mubr.bf16.gmra.mrb[0].mxu0 %v776
    %v3224 = vpop.f32.mrb[0].mxu0
    %v3225 = vadd.f32 %v3184, %v3224
    %v3226 = vpop.f32.mrb[0].mxu0
    %v3227 = vadd.f32 %v3186, %v3226
    %v3228 = vpop.f32.mrb[0].mxu0
    %v3229 = vpop.f32.mrb[0].mxu0
    %3230 = vdwg.mxu0
    %v3239 = vcombine.low %v2856, %v2858
    %v3240 = vcombine.low %v2979, %v2981
    %v3241 = vcombine.low %v3102, %v3104
    %v3242 = vcombine.low %v3225, %v3227
    %3247 = vst [vmem:[#allocation18] sm:$0xff] %v3239
    %3248 = vst [vmem:[#allocation18 + $0x8] sm:$0xff] %v3240
    %3249 = vst [vmem:[#allocation18 + $0x10] sm:$0xff] %v3241
    %3250 = vst [vmem:[#allocation18 + $0x18] sm:$0xff] %v3242
    %v3251 = vcombine.high %v2856, %v2858
    %v3252 = vcombine.high %v2979, %v2981
    %v3253 = vcombine.high %v3102, %v3104
    %v3254 = vcombine.high %v3225, %v3227
    %3259 = vst [vmem:[#allocation18 + $0x20] sm:$0xff] %v3251
    %3260 = vst [vmem:[#allocation18 + $0x28] sm:$0xff] %v3252
    %3261 = vst [vmem:[#allocation18 + $0x30] sm:$0xff] %v3253
    %3262 = vst [vmem:[#allocation18 + $0x38] sm:$0xff] %v3254
    // Predicated region
    $region74: #{tpu_custom_call.1} parent=1 // pred_check
      _
    $region75: #{tpu_custom_call.1} parent=1 // pred_check_branch
      %3264 = sbr.rel (0) target = $region77
    $region76: #{tpu_custom_call.1} parent=1 // pred_region
      %s3266 = ssub.s32 1024, 1024
      %3267 = vsyncadd [#allocation5], %s3266
      %s3269 = sshll.u32 [#allocation18], 4
      %s3270 = int_to_ptr.vmem [resolvable:$true] %s3269
      %3272 = dma.vmem_to_hbm [thread:$0]  %s3270, 1024, %s9, [#allocation5]
    $region77: #{tpu_custom_call.1} parent=1 // pred_fallthru
      _
    // Predicated region
    $region78: #{tpu_custom_call.1} parent=1 // pred_check
      _
    $region79: #{tpu_custom_call.1} parent=1 // pred_check_branch
      %3274 = sbr.rel (0) target = $region81
    $region80: #{tpu_custom_call.1} parent=1 // pred_region
      %3275 = dma.done [#allocation5], 1024
    $region81: #{tpu_custom_call.1} parent=1 // pred_fallthru
      _
    %3276 = vsyncpa [#allocation4], 1
    %3277 = vsyncpa [#allocation7], 1
    %3278 = vsyncpa [#allocation10], 1
    %3279 = vsyncpa [#allocation13], 1
    %3280 = vsyncpa [#allocation16], 1
    %3281 = vsyncpa [#allocation5], 1

</llo_original>
